<compile_context>
chip_gen: v5e
topology: v5e:2x2
jax: 0.10.0
libtpu: 0.0.40
codegen_flags: <defaults>
</compile_context>

<pallas_src>
import math

import jax
import jax.numpy as jnp
from jax import lax
from jax.experimental import pallas as pl
from jax.experimental.pallas import tpu as pltpu


def _layernorm(y, gamma, beta, eps=1e-5):
    # Single pass: sum and sum-of-squares (halves the cross-lane XLU reductions
    # vs. mean-then-variance).
    n = y.shape[-1]
    s = jnp.sum(y, axis=-1, keepdims=True)
    sq = jnp.sum(y * y, axis=-1, keepdims=True)
    mu = s * (1.0 / n)
    var = jnp.maximum(sq * (1.0 / n) - mu * mu, 0.0)
    return (y - mu) * lax.rsqrt(var + eps) * gamma + beta


def _make_kernel(num_heads, head_dim, mm_dtype):
    H, Dh = num_heads, head_dim

    def kernel(x_ref, wqkv_ref, bqkv_ref, wo_ref, bo_ref,
               g1_ref, be1_ref, w1_ref, b1_ref, w2_ref, b2_ref,
               g2_ref, be2_ref, o_ref):
        # x_ref: (L, E) -- one batch element (batch is grid axis 0).
        x = x_ref[...].astype(jnp.float32)
        L, E = x.shape

        # ---- fused QKV: one full-width 2-D matmul (L, E) @ (E, 3E) ----------
        qkv = jnp.dot(x.astype(mm_dtype), wqkv_ref[...],
                      preferred_element_type=jnp.float32) + bqkv_ref[...]
        # q/k/v are E-wide column blocks of the (L, 3E) result.
        q2 = qkv[:, :E]
        k2 = qkv[:, E:2 * E]
        v2 = qkv[:, 2 * E:]

        def split_heads(t):            # (L, E) -> (H, L, Dh), one relayout each
            return jnp.transpose(t.reshape(L, H, Dh), (1, 0, 2))

        q = split_heads(q2).astype(mm_dtype)   # softmax scale pre-folded into q
        k = split_heads(k2).astype(mm_dtype)
        v = split_heads(v2).astype(mm_dtype)

        # ---- attention: per-batch (H, L, L), head-batched MXU einsums --------
        s = jnp.einsum("hqd,hkd->hqk", q, k,
                       preferred_element_type=jnp.float32)
        m = jnp.max(s, axis=-1, keepdims=True)
        p = jnp.exp(s - m)
        denom = jnp.sum(p, axis=-1, keepdims=True)
        ctx = jnp.einsum("hqk,hkd->hqd", p.astype(mm_dtype), v,
                         preferred_element_type=jnp.float32)
        # post-PV normalization: O(H*L*Dh) scale instead of O(H*L*L) multiply
        ctx = ctx * pl.reciprocal(denom, approx=False)

        # ---- concat heads once, single (L, E) @ (E, E) output projection ----
        ctx2 = jnp.transpose(ctx, (1, 0, 2)).reshape(L, E)
        att = jnp.dot(ctx2.astype(mm_dtype), wo_ref[...],
                      preferred_element_type=jnp.float32) + bo_ref[...]

        # dropout(p=0) -> identity
        x1 = _layernorm(x + att, g1_ref[...], be1_ref[...])

        # ---- MLP --------------------------------------------------------------
        h1 = jnp.dot(x1.astype(mm_dtype), w1_ref[...],
                     preferred_element_type=jnp.float32) + b1_ref[...]
        h1 = jnp.maximum(h1, 0.0)
        mlp = jnp.dot(h1.astype(mm_dtype), w2_ref[...],
                      preferred_element_type=jnp.float32) + b2_ref[...]

        x2 = _layernorm(x1 + mlp, g2_ref[...], be2_ref[...])
        o_ref[...] = x2.astype(o_ref.dtype)

    return kernel


def transformer_layer(x, params, num_heads, *, matmul_dtype=jnp.bfloat16):
    """x: (L, N, E)  (PyTorch nn.MultiheadAttention default layout)."""
    L, N, E = x.shape
    assert E % num_heads == 0
    Dh = E // num_heads
    HID = params["w1"].shape[0]
    scale = 1.0 / math.sqrt(Dh)
    mm = matmul_dtype

    # --- host-side packing (tiny, one-time) -----------------------------------
    # QKV packed as (E, 3E) = [q | k | v] column blocks; softmax scale folded
    # into the q weight/bias.  Weights pre-cast to the MXU dtype (also halves
    # weight HBM traffic for bf16); biases / LN params stay f32.
    wqkv = jnp.concatenate(
        [params["wq"].T * scale, params["wk"].T, params["wv"].T],
        axis=-1).astype(mm)                                       # (E, 3E)
    bqkv = jnp.concatenate(
        [params["bq"] * scale, params["bk"], params["bv"]]
    ).reshape(1, 3 * E).astype(jnp.float32)                       # (1, 3E)
    wo = params["wo"].T.astype(mm)                                # (E, E)
    w1 = params["w1"].T.astype(mm)                                # (E, HID)
    w2 = params["w2"].T.astype(mm)                                # (HID, E)
    r2 = lambda b: b.reshape(1, -1).astype(jnp.float32)

    # (L, N, E) -> (N, L, E): one batch element per grid step (no dense mask).
    xb = jnp.transpose(x, (1, 0, 2))

    args = (xb, wqkv, bqkv, wo, r2(params["bo"]),
            r2(params["g1"]), r2(params["be1"]),
            w1, r2(params["b1"]), w2, r2(params["b2"]),
            r2(params["g2"]), r2(params["be2"]))

    x_spec = pl.BlockSpec((pl.Squeezed(), L, E), lambda n: (n, 0, 0))
    full = lambda a: pl.BlockSpec(a.shape, lambda n, nd=a.ndim: (0,) * nd)
    in_specs = [x_spec] + [full(a) for a in args[1:]]
    out_spec = pl.BlockSpec((pl.Squeezed(), L, E), lambda n: (n, 0, 0))

    # --- cost estimate / VMEM budget -------------------------------------------
    flops = 2 * N * (L * E * 3 * E                  # fused QKV
                     + 2 * num_heads * L * L * Dh   # scores + PV
                     + L * E * E                    # output projection
                     + 2 * L * E * HID)             # MLP
    transcendentals = N * (num_heads * L * L        # exp
                           + num_heads * L          # reciprocal
                           + 2 * L)                 # rsqrt (two LayerNorms)
    bytes_accessed = int(sum(int(a.size) * a.dtype.itemsize for a in args)
                         + L * N * E * x.dtype.itemsize)

    weight_bytes = sum(int(a.size) * a.dtype.itemsize for a in args[1:])
    block_bytes = 2 * (2 * L * E * 4)               # x + out, double-buffered
    interm_bytes = 4 * (L * 3 * E + 2 * num_heads * L * L
                        + 2 * num_heads * L * Dh + L * HID + 4 * L * E)
    vmem_limit = int(min(max(2 * (2 * weight_bytes + block_bytes + interm_bytes),
                             16 * 1024 * 1024),
                         64 * 1024 * 1024))

    kernel = _make_kernel(num_heads, Dh, mm)
    out = pl.pallas_call(
        kernel,
        out_shape=jax.ShapeDtypeStruct((N, L, E), x.dtype),
        grid=(N,),
        in_specs=in_specs,
        out_specs=out_spec,
        compiler_params=pltpu.CompilerParams(
            dimension_semantics=("parallel",),
            vmem_limit_bytes=vmem_limit),
        cost_estimate=pl.CostEstimate(
            flops=int(flops),
            transcendentals=int(transcendentals),
            bytes_accessed=bytes_accessed),
    )(*args)

    return jnp.transpose(out, (1, 0, 2))


# ---------------------------------------------------------------------------
# pure-JAX reference (same math, independent formulation) for correctness
# ---------------------------------------------------------------------------
def _layernorm_ref(y, gamma, beta, eps=1e-5):
    mu = jnp.mean(y, axis=-1, keepdims=True)
    var = jnp.mean((y - mu) ** 2, axis=-1, keepdims=True)
    return (y - mu) * lax.rsqrt(var + eps) * gamma + beta


def reference_forward(x, params, num_heads):
    L, N, E = x.shape
    head_dim = E // num_heads
    scale = 1.0 / math.sqrt(head_dim)

    def single(xb):  # xb: (L, E)
        q = xb @ params["wq"].T + params["bq"]
        k = xb @ params["wk"].T + params["bk"]
        v = xb @ params["wv"].T + params["bv"]
        outs = []
        for h in range(num_heads):
            sl = slice(h * head_dim, (h + 1) * head_dim)
            s = (q[:, sl] @ k[:, sl].T) * scale
            p = jax.nn.softmax(s, axis=-1)
            outs.append(p @ v[:, sl])
        att = jnp.concatenate(outs, axis=-1) @ params["wo"].T + params["bo"]
        x1 = _layernorm_ref(xb + att, params["g1"], params["be1"])
        h1 = jnp.maximum(x1 @ params["w1"].T + params["b1"], 0.0)
        mlp = h1 @ params["w2"].T + params["b2"]
        return _layernorm_ref(x1 + mlp, params["g2"], params["be2"])

    xb = jnp.transpose(x, (1, 0, 2))
    out = jax.vmap(single)(xb)
    return jnp.transpose(out, (1, 0, 2))


if __name__ == "__main__":
    # small shapes consistent with the module (TransformerLayer(W, W, 4, 0.1))
    L, N = 8, 2               # seq (points), batch
    E, HID = 32, 64           # input_dim, hidden_dim
    num_heads = 4

    key = jax.random.PRNGKey(0)
    ks = jax.random.split(key, 17)
    nrm = lambda k, shp, s=0.02: (s * jax.random.normal(k, shp)).astype(jnp.float32)

    params = {
        # attention in_proj split into q/k/v (each (E, E)) + biases
        "wq": nrm(ks[0], (E, E)), "bq": nrm(ks[1], (E,), 0.01),
        "wk": nrm(ks[2], (E, E)), "bk": nrm(ks[3], (E,), 0.01),
        "wv": nrm(ks[4], (E, E)), "bv": nrm(ks[5], (E,), 0.01),
        # out_proj
        "wo": nrm(ks[6], (E, E)), "bo": nrm(ks[7], (E,), 0.01),
        # MLP
        "w1": nrm(ks[8], (HID, E)), "b1": nrm(ks[9], (HID,), 0.01),
        "w2": nrm(ks[10], (E, HID)), "b2": nrm(ks[11], (E,), 0.01),
        # LayerNorms
        "g1": (1.0 + nrm(ks[12], (E,), 0.05)), "be1": nrm(ks[13], (E,), 0.01),
        "g2": (1.0 + nrm(ks[14], (E,), 0.05)), "be2": nrm(ks[15], (E,), 0.01),
    }

    x = jax.random.normal(ks[16], (L, N, E), jnp.float32)
    ref = jax.block_until_ready(reference_forward(x, params, num_heads))

    # f32 MXU path: tight check of the kernel math.
    out_f32 = jax.block_until_ready(
        transformer_layer(x, params, num_heads, matmul_dtype=jnp.float32))
    assert out_f32.shape == (L, N, E)
    err32 = float(jnp.max(jnp.abs(out_f32 - ref)))
    assert jnp.allclose(out_f32, ref, atol=1e-3, rtol=1e-3), \
        f"f32 path max abs err {err32}"

    # bf16 MXU operands (production setting per perf review); f32 accumulation,
    # f32 softmax/LayerNorm -> looser tolerance for bf16 operand rounding only.
    out_bf16 = jax.block_until_ready(
        transformer_layer(x, params, num_heads, matmul_dtype=jnp.bfloat16))
    assert out_bf16.shape == (L, N, E)
    errbf = float(jnp.max(jnp.abs(out_bf16 - ref)))
    assert jnp.allclose(out_bf16, ref, atol=5e-2, rtol=5e-2), \
        f"bf16 path max abs err {errbf}"

    print("KERNEL_OK")
</pallas_src>

<mosaic_0001>
module attributes {stable_mosaic.version = 11 : i64} {
  func.func @kernel(%arg0: i32, %arg1: memref<1x8x32xf32, #tpu.memory_space<vmem>>, %arg2: memref<32x96xf32, #tpu.memory_space<vmem>>, %arg3: memref<1x96xf32, #tpu.memory_space<vmem>>, %arg4: memref<32x32xf32, #tpu.memory_space<vmem>>, %arg5: memref<1x32xf32, #tpu.memory_space<vmem>>, %arg6: memref<1x32xf32, #tpu.memory_space<vmem>>, %arg7: memref<1x32xf32, #tpu.memory_space<vmem>>, %arg8: memref<32x64xf32, #tpu.memory_space<vmem>>, %arg9: memref<1x64xf32, #tpu.memory_space<vmem>>, %arg10: memref<64x32xf32, #tpu.memory_space<vmem>>, %arg11: memref<1x32xf32, #tpu.memory_space<vmem>>, %arg12: memref<1x32xf32, #tpu.memory_space<vmem>>, %arg13: memref<1x32xf32, #tpu.memory_space<vmem>>, %arg14: memref<1x8x32xf32, #tpu.memory_space<vmem>>) attributes {dimension_semantics = [#tpu.dimension_semantics<parallel>], iteration_bounds = array<i64: 2>, scalar_prefetch = 0 : i64, scratch_operands = 0 : i64, tpu.core_type = #tpu.core_type<tc>, window_params = [{transform_indices = @transform_0, window_bounds = array<i64: 1, 8, 32>}, {pipeline_mode = #tpu.pipeline_mode<synchronous>, transform_indices = @transform_1, window_bounds = array<i64: 32, 96>}, {pipeline_mode = #tpu.pipeline_mode<synchronous>, transform_indices = @transform_2, window_bounds = array<i64: 1, 96>}, {pipeline_mode = #tpu.pipeline_mode<synchronous>, transform_indices = @transform_3, window_bounds = array<i64: 32, 32>}, {pipeline_mode = #tpu.pipeline_mode<synchronous>, transform_indices = @transform_4, window_bounds = array<i64: 1, 32>}, {pipeline_mode = #tpu.pipeline_mode<synchronous>, transform_indices = @transform_5, window_bounds = array<i64: 1, 32>}, {pipeline_mode = #tpu.pipeline_mode<synchronous>, transform_indices = @transform_6, window_bounds = array<i64: 1, 32>}, {pipeline_mode = #tpu.pipeline_mode<synchronous>, transform_indices = @transform_7, window_bounds = array<i64: 32, 64>}, {pipeline_mode = #tpu.pipeline_mode<synchronous>, transform_indices = @transform_8, window_bounds = array<i64: 1, 64>}, {pipeline_mode = #tpu.pipeline_mode<synchronous>, transform_indices = @transform_9, window_bounds = array<i64: 64, 32>}, {pipeline_mode = #tpu.pipeline_mode<synchronous>, transform_indices = @transform_10, window_bounds = array<i64: 1, 32>}, {pipeline_mode = #tpu.pipeline_mode<synchronous>, transform_indices = @transform_11, window_bounds = array<i64: 1, 32>}, {pipeline_mode = #tpu.pipeline_mode<synchronous>, transform_indices = @transform_12, window_bounds = array<i64: 1, 32>}, {transform_indices = @transform_13, window_bounds = array<i64: 1, 8, 32>}]} {
    %c0 = arith.constant 0 : index
    %c0_0 = arith.constant 0 : index
    %c0_1 = arith.constant 0 : index
    %0 = vector.load %arg1[%c0, %c0_0, %c0_1] : memref<1x8x32xf32, #tpu.memory_space<vmem>>, vector<1x8x32xf32>
    %1 = vector.shape_cast %0 : vector<1x8x32xf32> to vector<8x32xf32>
    %c0_2 = arith.constant 0 : index
    %c0_3 = arith.constant 0 : index
    %2 = vector.load %arg2[%c0_2, %c0_3] : memref<32x96xf32, #tpu.memory_space<vmem>>, vector<32x96xf32>
    %cst = arith.constant dense<0.000000e+00> : vector<8x96xf32>
    %3 = tpu.matmul %1, %2, %cst {dimension_numbers = #tpu.dot_dimension_numbers<[1], [0], [0], [1], [0, 0, 1, 1], [], []>} : vector<8x32xf32>, vector<32x96xf32>, vector<8x96xf32> -> vector<8x96xf32>
    %c0_4 = arith.constant 0 : index
    %c0_5 = arith.constant 0 : index
    %4 = vector.load %arg3[%c0_4, %c0_5] : memref<1x96xf32, #tpu.memory_space<vmem>>, vector<1x96xf32>
    %5 = vector.broadcast %4 : vector<1x96xf32> to vector<8x96xf32>
    %6 = arith.addf %3, %5 : vector<8x96xf32>
    %7 = vector.extract_strided_slice %6 {offsets = [0, 0], sizes = [8, 32], strides = [1, 1]} : vector<8x96xf32> to vector<8x32xf32>
    %8 = vector.extract_strided_slice %6 {offsets = [0, 32], sizes = [8, 32], strides = [1, 1]} : vector<8x96xf32> to vector<8x32xf32>
    %9 = vector.extract_strided_slice %6 {offsets = [0, 64], sizes = [8, 32], strides = [1, 1]} : vector<8x96xf32> to vector<8x32xf32>
    %10 = vector.shape_cast %7 : vector<8x32xf32> to vector<8x4x8xf32>
    %11 = tpu.transpose %10, [1, 0, 2] : vector<8x4x8xf32> -> vector<4x8x8xf32>
    %12 = vector.shape_cast %8 : vector<8x32xf32> to vector<8x4x8xf32>
    %13 = tpu.transpose %12, [1, 0, 2] : vector<8x4x8xf32> -> vector<4x8x8xf32>
    %14 = vector.shape_cast %9 : vector<8x32xf32> to vector<8x4x8xf32>
    %15 = tpu.transpose %14, [1, 0, 2] : vector<8x4x8xf32> -> vector<4x8x8xf32>
    "tpu.trace_start"() <{level = 10 : i32, message = "hqd,hkd->hqk"}> : () -> ()
    %cst_6 = arith.constant dense<0.000000e+00> : vector<4x8x8xf32>
    %16 = tpu.matmul %11, %13, %cst_6 {dimension_numbers = #tpu.dot_dimension_numbers<[2], [2], [1], [1], [0, 0, 0, 1, 1, 1], [0], [0]>} : vector<4x8x8xf32>, vector<4x8x8xf32>, vector<4x8x8xf32> -> vector<4x8x8xf32>
    "tpu.trace_stop"() : () -> ()
    %cst_7 = arith.constant dense<0xFF800000> : vector<4x8xf32>
    %17 = vector.multi_reduction <maximumf>, %16, %cst_7 [2] : vector<4x8x8xf32> to vector<4x8xf32>
    %18 = vector.shape_cast %17 : vector<4x8xf32> to vector<4x8x1xf32>
    %19 = vector.broadcast %18 : vector<4x8x1xf32> to vector<4x8x8xf32>
    %20 = arith.subf %16, %19 : vector<4x8x8xf32>
    %21 = math.exp %20 : vector<4x8x8xf32>
    %cst_8 = arith.constant dense<0.000000e+00> : vector<4x8xf32>
    %22 = vector.multi_reduction <add>, %21, %cst_8 [2] : vector<4x8x8xf32> to vector<4x8xf32>
    %23 = vector.shape_cast %22 : vector<4x8xf32> to vector<4x8x1xf32>
    "tpu.trace_start"() <{level = 10 : i32, message = "hqk,hkd->hqd"}> : () -> ()
    %cst_9 = arith.constant dense<0.000000e+00> : vector<4x8x8xf32>
    %24 = tpu.matmul %21, %15, %cst_9 {dimension_numbers = #tpu.dot_dimension_numbers<[2], [1], [1], [2], [0, 0, 0, 1, 1, 2], [0], [0]>} : vector<4x8x8xf32>, vector<4x8x8xf32>, vector<4x8x8xf32> -> vector<4x8x8xf32>
    "tpu.trace_stop"() : () -> ()
    %25 = tpu.reciprocal %23 : vector<4x8x1xf32> -> vector<4x8x1xf32>
    %26 = vector.broadcast %25 : vector<4x8x1xf32> to vector<4x8x8xf32>
    %27 = arith.mulf %24, %26 : vector<4x8x8xf32>
    %28 = tpu.transpose %27, [1, 0, 2] : vector<4x8x8xf32> -> vector<8x4x8xf32>
    %29 = vector.shape_cast %28 : vector<8x4x8xf32> to vector<8x32xf32>
    %c0_10 = arith.constant 0 : index
    %c0_11 = arith.constant 0 : index
    %30 = vector.load %arg4[%c0_10, %c0_11] : memref<32x32xf32, #tpu.memory_space<vmem>>, vector<32x32xf32>
    %cst_12 = arith.constant dense<0.000000e+00> : vector<8x32xf32>
    %31 = tpu.matmul %29, %30, %cst_12 {dimension_numbers = #tpu.dot_dimension_numbers<[1], [0], [0], [1], [0, 0, 1, 1], [], []>} : vector<8x32xf32>, vector<32x32xf32>, vector<8x32xf32> -> vector<8x32xf32>
    %c0_13 = arith.constant 0 : index
    %c0_14 = arith.constant 0 : index
    %32 = vector.load %arg5[%c0_13, %c0_14] : memref<1x32xf32, #tpu.memory_space<vmem>>, vector<1x32xf32>
    %33 = vector.broadcast %32 : vector<1x32xf32> to vector<8x32xf32>
    %34 = arith.addf %31, %33 : vector<8x32xf32>
    %35 = arith.addf %1, %34 : vector<8x32xf32>
    %c0_15 = arith.constant 0 : index
    %c0_16 = arith.constant 0 : index
    %36 = vector.load %arg6[%c0_15, %c0_16] : memref<1x32xf32, #tpu.memory_space<vmem>>, vector<1x32xf32>
    %c0_17 = arith.constant 0 : index
    %c0_18 = arith.constant 0 : index
    %37 = vector.load %arg7[%c0_17, %c0_18] : memref<1x32xf32, #tpu.memory_space<vmem>>, vector<1x32xf32>
    %cst_19 = arith.constant dense<0.000000e+00> : vector<8xf32>
    %38 = vector.multi_reduction <add>, %35, %cst_19 [1] : vector<8x32xf32> to vector<8xf32>
    %39 = vector.shape_cast %38 : vector<8xf32> to vector<8x1xf32>
    %40 = arith.mulf %35, %35 : vector<8x32xf32>
    %cst_20 = arith.constant dense<0.000000e+00> : vector<8xf32>
    %41 = vector.multi_reduction <add>, %40, %cst_20 [1] : vector<8x32xf32> to vector<8xf32>
    %42 = vector.shape_cast %41 : vector<8xf32> to vector<8x1xf32>
    %cst_21 = arith.constant 3.125000e-02 : f32
    %43 = vector.broadcast %cst_21 : f32 to vector<8x1xf32>
    %44 = arith.mulf %39, %43 : vector<8x1xf32>
    %cst_22 = arith.constant 3.125000e-02 : f32
    %45 = vector.broadcast %cst_22 : f32 to vector<8x1xf32>
    %46 = arith.mulf %42, %45 : vector<8x1xf32>
    %47 = arith.mulf %44, %44 : vector<8x1xf32>
    %48 = arith.subf %46, %47 : vector<8x1xf32>
    %cst_23 = arith.constant 0.000000e+00 : f32
    %49 = vector.broadcast %cst_23 : f32 to vector<8x1xf32>
    %50 = arith.maximumf %48, %49 : vector<8x1xf32>
    %51 = vector.broadcast %44 : vector<8x1xf32> to vector<8x32xf32>
    %52 = arith.subf %35, %51 : vector<8x32xf32>
    %cst_24 = arith.constant 9.99999974E-6 : f32
    %53 = vector.broadcast %cst_24 : f32 to vector<8x1xf32>
    %54 = arith.addf %50, %53 : vector<8x1xf32>
    %55 = math.rsqrt %54 : vector<8x1xf32>
    %56 = vector.broadcast %55 : vector<8x1xf32> to vector<8x32xf32>
    %57 = arith.mulf %52, %56 : vector<8x32xf32>
    %58 = vector.broadcast %36 : vector<1x32xf32> to vector<8x32xf32>
    %59 = arith.mulf %57, %58 : vector<8x32xf32>
    %60 = vector.broadcast %37 : vector<1x32xf32> to vector<8x32xf32>
    %61 = arith.addf %59, %60 : vector<8x32xf32>
    %c0_25 = arith.constant 0 : index
    %c0_26 = arith.constant 0 : index
    %62 = vector.load %arg8[%c0_25, %c0_26] : memref<32x64xf32, #tpu.memory_space<vmem>>, vector<32x64xf32>
    %cst_27 = arith.constant dense<0.000000e+00> : vector<8x64xf32>
    %63 = tpu.matmul %61, %62, %cst_27 {dimension_numbers = #tpu.dot_dimension_numbers<[1], [0], [0], [1], [0, 0, 1, 1], [], []>} : vector<8x32xf32>, vector<32x64xf32>, vector<8x64xf32> -> vector<8x64xf32>
    %c0_28 = arith.constant 0 : index
    %c0_29 = arith.constant 0 : index
    %64 = vector.load %arg9[%c0_28, %c0_29] : memref<1x64xf32, #tpu.memory_space<vmem>>, vector<1x64xf32>
    %65 = vector.broadcast %64 : vector<1x64xf32> to vector<8x64xf32>
    %66 = arith.addf %63, %65 : vector<8x64xf32>
    %cst_30 = arith.constant 0.000000e+00 : f32
    %67 = vector.broadcast %cst_30 : f32 to vector<8x64xf32>
    %68 = arith.maximumf %66, %67 : vector<8x64xf32>
    %c0_31 = arith.constant 0 : index
    %c0_32 = arith.constant 0 : index
    %69 = vector.load %arg10[%c0_31, %c0_32] : memref<64x32xf32, #tpu.memory_space<vmem>>, vector<64x32xf32>
    %cst_33 = arith.constant dense<0.000000e+00> : vector<8x32xf32>
    %70 = tpu.matmul %68, %69, %cst_33 {dimension_numbers = #tpu.dot_dimension_numbers<[1], [0], [0], [1], [0, 0, 1, 1], [], []>} : vector<8x64xf32>, vector<64x32xf32>, vector<8x32xf32> -> vector<8x32xf32>
    %c0_34 = arith.constant 0 : index
    %c0_35 = arith.constant 0 : index
    %71 = vector.load %arg11[%c0_34, %c0_35] : memref<1x32xf32, #tpu.memory_space<vmem>>, vector<1x32xf32>
    %72 = vector.broadcast %71 : vector<1x32xf32> to vector<8x32xf32>
    %73 = arith.addf %70, %72 : vector<8x32xf32>
    %74 = arith.addf %61, %73 : vector<8x32xf32>
    %c0_36 = arith.constant 0 : index
    %c0_37 = arith.constant 0 : index
    %75 = vector.load %arg12[%c0_36, %c0_37] : memref<1x32xf32, #tpu.memory_space<vmem>>, vector<1x32xf32>
    %c0_38 = arith.constant 0 : index
    %c0_39 = arith.constant 0 : index
    %76 = vector.load %arg13[%c0_38, %c0_39] : memref<1x32xf32, #tpu.memory_space<vmem>>, vector<1x32xf32>
    %cst_40 = arith.constant dense<0.000000e+00> : vector<8xf32>
    %77 = vector.multi_reduction <add>, %74, %cst_40 [1] : vector<8x32xf32> to vector<8xf32>
    %78 = vector.shape_cast %77 : vector<8xf32> to vector<8x1xf32>
    %79 = arith.mulf %74, %74 : vector<8x32xf32>
    %cst_41 = arith.constant dense<0.000000e+00> : vector<8xf32>
    %80 = vector.multi_reduction <add>, %79, %cst_41 [1] : vector<8x32xf32> to vector<8xf32>
    %81 = vector.shape_cast %80 : vector<8xf32> to vector<8x1xf32>
    %cst_42 = arith.constant 3.125000e-02 : f32
    %82 = vector.broadcast %cst_42 : f32 to vector<8x1xf32>
    %83 = arith.mulf %78, %82 : vector<8x1xf32>
    %cst_43 = arith.constant 3.125000e-02 : f32
    %84 = vector.broadcast %cst_43 : f32 to vector<8x1xf32>
    %85 = arith.mulf %81, %84 : vector<8x1xf32>
    %86 = arith.mulf %83, %83 : vector<8x1xf32>
    %87 = arith.subf %85, %86 : vector<8x1xf32>
    %cst_44 = arith.constant 0.000000e+00 : f32
    %88 = vector.broadcast %cst_44 : f32 to vector<8x1xf32>
    %89 = arith.maximumf %87, %88 : vector<8x1xf32>
    %90 = vector.broadcast %83 : vector<8x1xf32> to vector<8x32xf32>
    %91 = arith.subf %74, %90 : vector<8x32xf32>
    %cst_45 = arith.constant 9.99999974E-6 : f32
    %92 = vector.broadcast %cst_45 : f32 to vector<8x1xf32>
    %93 = arith.addf %89, %92 : vector<8x1xf32>
    %94 = math.rsqrt %93 : vector<8x1xf32>
    %95 = vector.broadcast %94 : vector<8x1xf32> to vector<8x32xf32>
    %96 = arith.mulf %91, %95 : vector<8x32xf32>
    %97 = vector.broadcast %75 : vector<1x32xf32> to vector<8x32xf32>
    %98 = arith.mulf %96, %97 : vector<8x32xf32>
    %99 = vector.broadcast %76 : vector<1x32xf32> to vector<8x32xf32>
    %100 = arith.addf %98, %99 : vector<8x32xf32>
    %c0_46 = arith.constant 0 : index
    %c0_47 = arith.constant 0 : index
    %c0_48 = arith.constant 0 : index
    %101 = vector.load %arg14[%c0_46, %c0_47, %c0_48] : memref<1x8x32xf32, #tpu.memory_space<vmem>>, vector<1x8x32xf32>
    %102 = vector.shape_cast %101 : vector<1x8x32xf32> to vector<8x32xf32>
    %103 = vector.shape_cast %100 : vector<8x32xf32> to vector<1x8x32xf32>
    tpu.vector_store %arg14[%c0_46, %c0_47, %c0_48], %103 {strides = array<i32>} : memref<1x8x32xf32, #tpu.memory_space<vmem>>, vector<1x8x32xf32>,
    return
  }
  func.func @transform_0(%arg0: i32) -> (i32, i32, i32) {
    %c0_i32 = arith.constant 0 : i32
    %c0_i32_0 = arith.constant 0 : i32
    %c0_i32_1 = arith.constant 0 : i32
    return %arg0, %c0_i32, %c0_i32_0 : i32, i32, i32
  }
  func.func @transform_1(%arg0: i32) -> (i32, i32) {
    %c0_i32 = arith.constant 0 : i32
    %c0_i32_0 = arith.constant 0 : i32
    %c0_i32_1 = arith.constant 0 : i32
    return %c0_i32, %c0_i32_0 : i32, i32
  }
  func.func @transform_2(%arg0: i32) -> (i32, i32) {
    %c0_i32 = arith.constant 0 : i32
    %c0_i32_0 = arith.constant 0 : i32
    %c0_i32_1 = arith.constant 0 : i32
    return %c0_i32, %c0_i32_0 : i32, i32
  }
  func.func @transform_3(%arg0: i32) -> (i32, i32) {
    %c0_i32 = arith.constant 0 : i32
    %c0_i32_0 = arith.constant 0 : i32
    %c0_i32_1 = arith.constant 0 : i32
    return %c0_i32, %c0_i32_0 : i32, i32
  }
  func.func @transform_4(%arg0: i32) -> (i32, i32) {
    %c0_i32 = arith.constant 0 : i32
    %c0_i32_0 = arith.constant 0 : i32
    %c0_i32_1 = arith.constant 0 : i32
    return %c0_i32, %c0_i32_0 : i32, i32
  }
  func.func @transform_5(%arg0: i32) -> (i32, i32) {
    %c0_i32 = arith.constant 0 : i32
    %c0_i32_0 = arith.constant 0 : i32
    %c0_i32_1 = arith.constant 0 : i32
    return %c0_i32, %c0_i32_0 : i32, i32
  }
  func.func @transform_6(%arg0: i32) -> (i32, i32) {
    %c0_i32 = arith.constant 0 : i32
    %c0_i32_0 = arith.constant 0 : i32
    %c0_i32_1 = arith.constant 0 : i32
    return %c0_i32, %c0_i32_0 : i32, i32
  }
  func.func @transform_7(%arg0: i32) -> (i32, i32) {
    %c0_i32 = arith.constant 0 : i32
    %c0_i32_0 = arith.constant 0 : i32
    %c0_i32_1 = arith.constant 0 : i32
    return %c0_i32, %c0_i32_0 : i32, i32
  }
  func.func @transform_8(%arg0: i32) -> (i32, i32) {
    %c0_i32 = arith.constant 0 : i32
    %c0_i32_0 = arith.constant 0 : i32
    %c0_i32_1 = arith.constant 0 : i32
    return %c0_i32, %c0_i32_0 : i32, i32
  }
  func.func @transform_9(%arg0: i32) -> (i32, i32) {
    %c0_i32 = arith.constant 0 : i32
    %c0_i32_0 = arith.constant 0 : i32
    %c0_i32_1 = arith.constant 0 : i32
    return %c0_i32, %c0_i32_0 : i32, i32
  }
  func.func @transform_10(%arg0: i32) -> (i32, i32) {
    %c0_i32 = arith.constant 0 : i32
    %c0_i32_0 = arith.constant 0 : i32
    %c0_i32_1 = arith.constant 0 : i32
    return %c0_i32, %c0_i32_0 : i32, i32
  }
  func.func @transform_11(%arg0: i32) -> (i32, i32) {
    %c0_i32 = arith.constant 0 : i32
    %c0_i32_0 = arith.constant 0 : i32
    %c0_i32_1 = arith.constant 0 : i32
    return %c0_i32, %c0_i32_0 : i32, i32
  }
  func.func @transform_12(%arg0: i32) -> (i32, i32) {
    %c0_i32 = arith.constant 0 : i32
    %c0_i32_0 = arith.constant 0 : i32
    %c0_i32_1 = arith.constant 0 : i32
    return %c0_i32, %c0_i32_0 : i32, i32
  }
  func.func @transform_13(%arg0: i32) -> (i32, i32, i32) {
    %c0_i32 = arith.constant 0 : i32
    %c0_i32_0 = arith.constant 0 : i32
    %c0_i32_1 = arith.constant 0 : i32
    return %arg0, %c0_i32, %c0_i32_0 : i32, i32, i32
  }
}

</mosaic_0001>

<llo_original>
// kernel: tpu_custom_call.1
$region0: #{tpu_custom_call.1}
  #allocation0 [shape = 'u32[]', space=smem, size = 0x4, offset = 0x4, fixed_abs, tag = 'smem constant byte address 0x4 - core index']
  #allocation1 [shape = 'u32[72,128]{1,0:T(1,128)}', space=vmem, size = 0x9000, scoped, tag = 'internal scratch']
  %s0 = inlined_call_operand.hbm [shape: f32[2,8,32], index: 0, kind: input, shape index: {}]
  %s1 = inlined_call_operand.vmem [shape: f32[32,96], index: 1, kind: input, shape index: {}]
  %s2 = inlined_call_operand.vmem [shape: f32[1,96], index: 2, kind: input, shape index: {}]
  %s3 = inlined_call_operand.vmem [shape: f32[32,32], index: 3, kind: input, shape index: {}]
  %s4 = inlined_call_operand.vmem [shape: f32[1,32], index: 4, kind: input, shape index: {}]
  %s5 = inlined_call_operand.vmem [shape: f32[1,32], index: 5, kind: input, shape index: {}]
  %s6 = inlined_call_operand.vmem [shape: f32[1,32], index: 6, kind: input, shape index: {}]
  %s7 = inlined_call_operand.vmem [shape: f32[32,64], index: 7, kind: input, shape index: {}]
  %s8 = inlined_call_operand.vmem [shape: f32[1,64], index: 8, kind: input, shape index: {}]
  %s9 = inlined_call_operand.vmem [shape: f32[64,32], index: 9, kind: input, shape index: {}]
  %s10 = inlined_call_operand.vmem [shape: f32[1,32], index: 10, kind: input, shape index: {}]
  %s11 = inlined_call_operand.vmem [shape: f32[1,32], index: 11, kind: input, shape index: {}]
  %s12 = inlined_call_operand.vmem [shape: f32[1,32], index: 12, kind: input, shape index: {}]
  %s13 = inlined_call_operand.hbm [shape: f32[2,8,32], index: 13, kind: output, shape index: {}]
  %s14 = sld [smem:[#allocation0]]
  $region89: #{tpu_custom_call.1} parent=0
    _
  %s16 = ssub.s32 1, %s14
  %s17 = scalar_select 0, %s16, %s14
  $region1: #{tpu_custom_call.1} parent=0
    #allocation2 [shape = 'u8[8192]{0}', space=vmem, size = 0x2000, scoped, tag = 'input window, operand 0']
    #allocation3 [shape = 's32[2]{0}', space=sflag, size = 0x8, scoped, tag = 'scoped memory for tpu_custom_call.1']
    #allocation4 [shape = 's32[2]{0}', space=sflag, size = 0x8, scoped, tag = 'scoped memory for tpu_custom_call.1']
    #allocation5 [shape = 'u8[8192]{0}', space=vmem, size = 0x2000, scoped, tag = 'output window, operand 0']
    %18 = vsyncpa [#allocation3], 0
    %s19 = scalar_lea.sflag [#allocation3], 1
    %20 = vsyncpa %s19, 0
    %21 = vsyncpa [#allocation4], 0
    %s22 = scalar_lea.sflag [#allocation4], 1
    %23 = vsyncpa %s22, 0
    loop: start=0, step=1, limit=4
    $region2: #{tpu_custom_call.1} parent=1 // loop_pre_header
      _
    $region3: #{tpu_custom_call.1} parent=1 // loop_header
      %s25 = sphi 0, %s29
      %p26 = scmp.ge.s32.totalorder %s25, 4
      %s35 = sphi 0, %s37
      %s38 = sphi 0, %s35
      %s39 = sphi 0, %s38
      %s55 = sphi 0, %s39
      %s59 = sphi 0, %s59
      %s61 = sphi 0, %s59
      %s62 = sphi 0, %s61
      %s76 = sphi 0, %s62
      %s80 = sphi 0, %s80
      %s82 = sphi 0, %s80
      %s83 = sphi 0, %s82
      %s97 = sphi 0, %s83
      %s101 = sphi 0, %s101
      %s103 = sphi 0, %s101
      %s104 = sphi 0, %s103
      %s118 = sphi 0, %s104
      %s122 = sphi 0, %s122
      %s124 = sphi 0, %s122
      %s125 = sphi 0, %s124
      %s139 = sphi 0, %s125
      %s143 = sphi 0, %s143
      %s145 = sphi 0, %s143
      %s146 = sphi 0, %s145
      %s160 = sphi 0, %s146
      %s164 = sphi 0, %s164
      %s166 = sphi 0, %s164
      %s167 = sphi 0, %s166
      %s181 = sphi 0, %s167
      %s185 = sphi 0, %s185
      %s187 = sphi 0, %s185
      %s188 = sphi 0, %s187
      %s202 = sphi 0, %s188
      %s206 = sphi 0, %s206
      %s208 = sphi 0, %s206
      %s209 = sphi 0, %s208
      %s223 = sphi 0, %s209
      %s227 = sphi 0, %s227
      %s229 = sphi 0, %s227
      %s230 = sphi 0, %s229
      %s244 = sphi 0, %s230
      %s248 = sphi 0, %s248
      %s250 = sphi 0, %s248
      %s251 = sphi 0, %s250
      %s265 = sphi 0, %s251
      %s269 = sphi 0, %s269
      %s271 = sphi 0, %s269
      %s272 = sphi 0, %s271
      %s286 = sphi 0, %s272
      %s290 = sphi 0, %s290
      %s292 = sphi 0, %s290
      %s293 = sphi 0, %s292
      %s307 = sphi 0, %s293
      %s313 = sphi 0, %s315
      %s316 = sphi 0, %s313
      %s317 = sphi 0, %s316
      %s333 = sphi 0, %s317
    $region4: #{tpu_custom_call.1} parent=1 // loop_header_branch
      %28 = sbr.rel (%p26) target = $region8
    $region5: #{tpu_custom_call.1} parent=1 // loop_body
      %s30 = ssub.s32 %s25, 1
      %s31 = ssub.s32 %s25, 2
      %s32 = sadd.s32 %s25, 1
      %s33 = ssub.s32 %s25, %s32
      %p34 = scmp.eq.s32.totalorder %s33, 0
      %s36 = sadd.s32 %s35, 1
      %s37 = scalar_select %p34, %s35, %s36
      %p40 = pneg %p34
      %p41 = scmp.eq.s32.totalorder %s25, 1
      %p42 = por %p40, %p41
      %p43 = scmp.ne.s32.totalorder %s35, %s38
      %p44 = scmp.eq.s32.totalorder %s25, 0
      %p45 = por %p43, %p44
      %p46 = scmp.ne.s32.totalorder %s35, %s38
      %p47 = scmp.eq.s32.totalorder %s30, 1
      %p48 = por %p46, %p47
      %p49 = scmp.ne.s32.totalorder %s38, %s39
      %p50 = scmp.eq.s32.totalorder %s30, 0
      %p51 = por %p49, %p50
      %p52 = scmp.ne.s32.totalorder %s38, %s39
      %p53 = scmp.eq.s32.totalorder %s31, 1
      %p54 = por %p52, %p53
      %p56 = scmp.ne.s32.totalorder %s39, %s55
      %p57 = scmp.eq.s32.totalorder %s31, 0
      %p58 = por %p56, %p57
      %s60 = sadd.s32 %s59, 1
      %p63 = scmp.eq.s32.totalorder %s25, 1
      %p64 = scmp.ne.s32.totalorder %s59, %s61
      %p65 = scmp.eq.s32.totalorder %s25, 0
      %p66 = por %p64, %p65
      %p67 = scmp.ne.s32.totalorder %s59, %s61
      %p68 = scmp.eq.s32.totalorder %s30, 1
      %p69 = por %p67, %p68
      %p70 = scmp.ne.s32.totalorder %s61, %s62
      %p71 = scmp.eq.s32.totalorder %s30, 0
      %p72 = por %p70, %p71
      %p73 = scmp.ne.s32.totalorder %s61, %s62
      %p74 = scmp.eq.s32.totalorder %s31, 1
      %p75 = por %p73, %p74
      %p77 = scmp.ne.s32.totalorder %s62, %s76
      %p78 = scmp.eq.s32.totalorder %s31, 0
      %p79 = por %p77, %p78
      %s81 = sadd.s32 %s80, 1
      %p84 = scmp.eq.s32.totalorder %s25, 1
      %p85 = scmp.ne.s32.totalorder %s80, %s82
      %p86 = scmp.eq.s32.totalorder %s25, 0
      %p87 = por %p85, %p86
      %p88 = scmp.ne.s32.totalorder %s80, %s82
      %p89 = scmp.eq.s32.totalorder %s30, 1
      %p90 = por %p88, %p89
      %p91 = scmp.ne.s32.totalorder %s82, %s83
      %p92 = scmp.eq.s32.totalorder %s30, 0
      %p93 = por %p91, %p92
      %p94 = scmp.ne.s32.totalorder %s82, %s83
      %p95 = scmp.eq.s32.totalorder %s31, 1
      %p96 = por %p94, %p95
      %p98 = scmp.ne.s32.totalorder %s83, %s97
      %p99 = scmp.eq.s32.totalorder %s31, 0
      %p100 = por %p98, %p99
      %s102 = sadd.s32 %s101, 1
      %p105 = scmp.eq.s32.totalorder %s25, 1
      %p106 = scmp.ne.s32.totalorder %s101, %s103
      %p107 = scmp.eq.s32.totalorder %s25, 0
      %p108 = por %p106, %p107
      %p109 = scmp.ne.s32.totalorder %s101, %s103
      %p110 = scmp.eq.s32.totalorder %s30, 1
      %p111 = por %p109, %p110
      %p112 = scmp.ne.s32.totalorder %s103, %s104
      %p113 = scmp.eq.s32.totalorder %s30, 0
      %p114 = por %p112, %p113
      %p115 = scmp.ne.s32.totalorder %s103, %s104
      %p116 = scmp.eq.s32.totalorder %s31, 1
      %p117 = por %p115, %p116
      %p119 = scmp.ne.s32.totalorder %s104, %s118
      %p120 = scmp.eq.s32.totalorder %s31, 0
      %p121 = por %p119, %p120
      %s123 = sadd.s32 %s122, 1
      %p126 = scmp.eq.s32.totalorder %s25, 1
      %p127 = scmp.ne.s32.totalorder %s122, %s124
      %p128 = scmp.eq.s32.totalorder %s25, 0
      %p129 = por %p127, %p128
      %p130 = scmp.ne.s32.totalorder %s122, %s124
      %p131 = scmp.eq.s32.totalorder %s30, 1
      %p132 = por %p130, %p131
      %p133 = scmp.ne.s32.totalorder %s124, %s125
      %p134 = scmp.eq.s32.totalorder %s30, 0
      %p135 = por %p133, %p134
      %p136 = scmp.ne.s32.totalorder %s124, %s125
      %p137 = scmp.eq.s32.totalorder %s31, 1
      %p138 = por %p136, %p137
      %p140 = scmp.ne.s32.totalorder %s125, %s139
      %p141 = scmp.eq.s32.totalorder %s31, 0
      %p142 = por %p140, %p141
      %s144 = sadd.s32 %s143, 1
      %p147 = scmp.eq.s32.totalorder %s25, 1
      %p148 = scmp.ne.s32.totalorder %s143, %s145
      %p149 = scmp.eq.s32.totalorder %s25, 0
      %p150 = por %p148, %p149
      %p151 = scmp.ne.s32.totalorder %s143, %s145
      %p152 = scmp.eq.s32.totalorder %s30, 1
      %p153 = por %p151, %p152
      %p154 = scmp.ne.s32.totalorder %s145, %s146
      %p155 = scmp.eq.s32.totalorder %s30, 0
      %p156 = por %p154, %p155
      %p157 = scmp.ne.s32.totalorder %s145, %s146
      %p158 = scmp.eq.s32.totalorder %s31, 1
      %p159 = por %p157, %p158
      %p161 = scmp.ne.s32.totalorder %s146, %s160
      %p162 = scmp.eq.s32.totalorder %s31, 0
      %p163 = por %p161, %p162
      %s165 = sadd.s32 %s164, 1
      %p168 = scmp.eq.s32.totalorder %s25, 1
      %p169 = scmp.ne.s32.totalorder %s164, %s166
      %p170 = scmp.eq.s32.totalorder %s25, 0
      %p171 = por %p169, %p170
      %p172 = scmp.ne.s32.totalorder %s164, %s166
      %p173 = scmp.eq.s32.totalorder %s30, 1
      %p174 = por %p172, %p173
      %p175 = scmp.ne.s32.totalorder %s166, %s167
      %p176 = scmp.eq.s32.totalorder %s30, 0
      %p177 = por %p175, %p176
      %p178 = scmp.ne.s32.totalorder %s166, %s167
      %p179 = scmp.eq.s32.totalorder %s31, 1
      %p180 = por %p178, %p179
      %p182 = scmp.ne.s32.totalorder %s167, %s181
      %p183 = scmp.eq.s32.totalorder %s31, 0
      %p184 = por %p182, %p183
      %s186 = sadd.s32 %s185, 1
      %p189 = scmp.eq.s32.totalorder %s25, 1
      %p190 = scmp.ne.s32.totalorder %s185, %s187
      %p191 = scmp.eq.s32.totalorder %s25, 0
      %p192 = por %p190, %p191
      %p193 = scmp.ne.s32.totalorder %s185, %s187
      %p194 = scmp.eq.s32.totalorder %s30, 1
      %p195 = por %p193, %p194
      %p196 = scmp.ne.s32.totalorder %s187, %s188
      %p197 = scmp.eq.s32.totalorder %s30, 0
      %p198 = por %p196, %p197
      %p199 = scmp.ne.s32.totalorder %s187, %s188
      %p200 = scmp.eq.s32.totalorder %s31, 1
      %p201 = por %p199, %p200
      %p203 = scmp.ne.s32.totalorder %s188, %s202
      %p204 = scmp.eq.s32.totalorder %s31, 0
      %p205 = por %p203, %p204
      %s207 = sadd.s32 %s206, 1
      %p210 = scmp.eq.s32.totalorder %s25, 1
      %p211 = scmp.ne.s32.totalorder %s206, %s208
      %p212 = scmp.eq.s32.totalorder %s25, 0
      %p213 = por %p211, %p212
      %p214 = scmp.ne.s32.totalorder %s206, %s208
      %p215 = scmp.eq.s32.totalorder %s30, 1
      %p216 = por %p214, %p215
      %p217 = scmp.ne.s32.totalorder %s208, %s209
      %p218 = scmp.eq.s32.totalorder %s30, 0
      %p219 = por %p217, %p218
      %p220 = scmp.ne.s32.totalorder %s208, %s209
      %p221 = scmp.eq.s32.totalorder %s31, 1
      %p222 = por %p220, %p221
      %p224 = scmp.ne.s32.totalorder %s209, %s223
      %p225 = scmp.eq.s32.totalorder %s31, 0
      %p226 = por %p224, %p225
      %s228 = sadd.s32 %s227, 1
      %p231 = scmp.eq.s32.totalorder %s25, 1
      %p232 = scmp.ne.s32.totalorder %s227, %s229
      %p233 = scmp.eq.s32.totalorder %s25, 0
      %p234 = por %p232, %p233
      %p235 = scmp.ne.s32.totalorder %s227, %s229
      %p236 = scmp.eq.s32.totalorder %s30, 1
      %p237 = por %p235, %p236
      %p238 = scmp.ne.s32.totalorder %s229, %s230
      %p239 = scmp.eq.s32.totalorder %s30, 0
      %p240 = por %p238, %p239
      %p241 = scmp.ne.s32.totalorder %s229, %s230
      %p242 = scmp.eq.s32.totalorder %s31, 1
      %p243 = por %p241, %p242
      %p245 = scmp.ne.s32.totalorder %s230, %s244
      %p246 = scmp.eq.s32.totalorder %s31, 0
      %p247 = por %p245, %p246
      %s249 = sadd.s32 %s248, 1
      %p252 = scmp.eq.s32.totalorder %s25, 1
      %p253 = scmp.ne.s32.totalorder %s248, %s250
      %p254 = scmp.eq.s32.totalorder %s25, 0
      %p255 = por %p253, %p254
      %p256 = scmp.ne.s32.totalorder %s248, %s250
      %p257 = scmp.eq.s32.totalorder %s30, 1
      %p258 = por %p256, %p257
      %p259 = scmp.ne.s32.totalorder %s250, %s251
      %p260 = scmp.eq.s32.totalorder %s30, 0
      %p261 = por %p259, %p260
      %p262 = scmp.ne.s32.totalorder %s250, %s251
      %p263 = scmp.eq.s32.totalorder %s31, 1
      %p264 = por %p262, %p263
      %p266 = scmp.ne.s32.totalorder %s251, %s265
      %p267 = scmp.eq.s32.totalorder %s31, 0
      %p268 = por %p266, %p267
      %s270 = sadd.s32 %s269, 1
      %p273 = scmp.eq.s32.totalorder %s25, 1
      %p274 = scmp.ne.s32.totalorder %s269, %s271
      %p275 = scmp.eq.s32.totalorder %s25, 0
      %p276 = por %p274, %p275
      %p277 = scmp.ne.s32.totalorder %s269, %s271
      %p278 = scmp.eq.s32.totalorder %s30, 1
      %p279 = por %p277, %p278
      %p280 = scmp.ne.s32.totalorder %s271, %s272
      %p281 = scmp.eq.s32.totalorder %s30, 0
      %p282 = por %p280, %p281
      %p283 = scmp.ne.s32.totalorder %s271, %s272
      %p284 = scmp.eq.s32.totalorder %s31, 1
      %p285 = por %p283, %p284
      %p287 = scmp.ne.s32.totalorder %s272, %s286
      %p288 = scmp.eq.s32.totalorder %s31, 0
      %p289 = por %p287, %p288
      %s291 = sadd.s32 %s290, 1
      %p294 = scmp.eq.s32.totalorder %s25, 1
      %p295 = scmp.ne.s32.totalorder %s290, %s292
      %p296 = scmp.eq.s32.totalorder %s25, 0
      %p297 = por %p295, %p296
      %p298 = scmp.ne.s32.totalorder %s290, %s292
      %p299 = scmp.eq.s32.totalorder %s30, 1
      %p300 = por %p298, %p299
      %p301 = scmp.ne.s32.totalorder %s292, %s293
      %p302 = scmp.eq.s32.totalorder %s30, 0
      %p303 = por %p301, %p302
      %p304 = scmp.ne.s32.totalorder %s292, %s293
      %p305 = scmp.eq.s32.totalorder %s31, 1
      %p306 = por %p304, %p305
      %p308 = scmp.ne.s32.totalorder %s293, %s307
      %p309 = scmp.eq.s32.totalorder %s31, 0
      %p310 = por %p308, %p309
      %s311 = ssub.s32 %s25, %s32
      %p312 = scmp.eq.s32.totalorder %s311, 0
      %s314 = sadd.s32 %s313, 1
      %s315 = scalar_select %p312, %s313, %s314
      %p318 = pneg %p312
      %p319 = scmp.eq.s32.totalorder %s25, 1
      %p320 = por %p318, %p319
      %p321 = scmp.ne.s32.totalorder %s313, %s316
      %p322 = scmp.eq.s32.totalorder %s25, 0
      %p323 = por %p321, %p322
      %p324 = scmp.ne.s32.totalorder %s313, %s316
      %p325 = scmp.eq.s32.totalorder %s30, 1
      %p326 = por %p324, %p325
      %p327 = scmp.ne.s32.totalorder %s316, %s317
      %p328 = scmp.eq.s32.totalorder %s30, 0
      %p329 = por %p327, %p328
      %p330 = scmp.ne.s32.totalorder %s316, %s317
      %p331 = scmp.eq.s32.totalorder %s31, 1
      %p332 = por %p330, %p331
      %p334 = scmp.ne.s32.totalorder %s317, %s333
      %p335 = scmp.eq.s32.totalorder %s31, 0
      %p336 = por %p334, %p335
      %p337 = scmp.le.s32.totalorder 1, %s25
      %p338 = scmp.lt.s32.totalorder %s25, 3
      %p339 = pnand %p337, %p338
      %p340 = pneg %p339
      // Predicated region
      $region9: #{tpu_custom_call.1} parent=5 // pred_check
        _
      $region10: #{tpu_custom_call.1} parent=5 // pred_check_branch
        %342 = sbr.rel (%p339) target = $region12
      $region11: #{tpu_custom_call.1} parent=5 // pred_region
        %s343 = ssub.s32 %s25, 1
        // Predicated region
        $region13: #{tpu_custom_call.1} parent=11 // pred_check
          %p344 = pneg %p72
        $region14: #{tpu_custom_call.1} parent=11 // pred_check_branch
          %346 = sbr.rel (%p344) target = $region16
        $region15: #{tpu_custom_call.1} parent=11 // pred_region
          _
        $region16: #{tpu_custom_call.1} parent=11 // pred_fallthru
          _
        // Predicated region
        $region17: #{tpu_custom_call.1} parent=11 // pred_check
          %p347 = pneg %p93
        $region18: #{tpu_custom_call.1} parent=11 // pred_check_branch
          %349 = sbr.rel (%p347) target = $region20
        $region19: #{tpu_custom_call.1} parent=11 // pred_region
          _
        $region20: #{tpu_custom_call.1} parent=11 // pred_fallthru
          _
        // Predicated region
        $region21: #{tpu_custom_call.1} parent=11 // pred_check
          %p350 = pneg %p114
        $region22: #{tpu_custom_call.1} parent=11 // pred_check_branch
          %352 = sbr.rel (%p350) target = $region24
        $region23: #{tpu_custom_call.1} parent=11 // pred_region
          _
        $region24: #{tpu_custom_call.1} parent=11 // pred_fallthru
          _
        // Predicated region
        $region25: #{tpu_custom_call.1} parent=11 // pred_check
          %p353 = pneg %p135
        $region26: #{tpu_custom_call.1} parent=11 // pred_check_branch
          %355 = sbr.rel (%p353) target = $region28
        $region27: #{tpu_custom_call.1} parent=11 // pred_region
          _
        $region28: #{tpu_custom_call.1} parent=11 // pred_fallthru
          _
        // Predicated region
        $region29: #{tpu_custom_call.1} parent=11 // pred_check
          %p356 = pneg %p156
        $region30: #{tpu_custom_call.1} parent=11 // pred_check_branch
          %358 = sbr.rel (%p356) target = $region32
        $region31: #{tpu_custom_call.1} parent=11 // pred_region
          _
        $region32: #{tpu_custom_call.1} parent=11 // pred_fallthru
          _
        // Predicated region
        $region33: #{tpu_custom_call.1} parent=11 // pred_check
          %p359 = pneg %p177
        $region34: #{tpu_custom_call.1} parent=11 // pred_check_branch
          %361 = sbr.rel (%p359) target = $region36
        $region35: #{tpu_custom_call.1} parent=11 // pred_region
          _
        $region36: #{tpu_custom_call.1} parent=11 // pred_fallthru
          _
        // Predicated region
        $region37: #{tpu_custom_call.1} parent=11 // pred_check
          %p362 = pneg %p198
        $region38: #{tpu_custom_call.1} parent=11 // pred_check_branch
          %364 = sbr.rel (%p362) target = $region40
        $region39: #{tpu_custom_call.1} parent=11 // pred_region
          _
        $region40: #{tpu_custom_call.1} parent=11 // pred_fallthru
          _
        // Predicated region
        $region41: #{tpu_custom_call.1} parent=11 // pred_check
          %p365 = pneg %p219
        $region42: #{tpu_custom_call.1} parent=11 // pred_check_branch
          %367 = sbr.rel (%p365) target = $region44
        $region43: #{tpu_custom_call.1} parent=11 // pred_region
          _
        $region44: #{tpu_custom_call.1} parent=11 // pred_fallthru
          _
        // Predicated region
        $region45: #{tpu_custom_call.1} parent=11 // pred_check
          %p368 = pneg %p240
        $region46: #{tpu_custom_call.1} parent=11 // pred_check_branch
          %370 = sbr.rel (%p368) target = $region48
        $region47: #{tpu_custom_call.1} parent=11 // pred_region
          _
        $region48: #{tpu_custom_call.1} parent=11 // pred_fallthru
          _
        // Predicated region
        $region49: #{tpu_custom_call.1} parent=11 // pred_check
          %p371 = pneg %p261
        $region50: #{tpu_custom_call.1} parent=11 // pred_check_branch
          %373 = sbr.rel (%p371) target = $region52
        $region51: #{tpu_custom_call.1} parent=11 // pred_region
          _
        $region52: #{tpu_custom_call.1} parent=11 // pred_fallthru
          _
        // Predicated region
        $region53: #{tpu_custom_call.1} parent=11 // pred_check
          %p374 = pneg %p282
        $region54: #{tpu_custom_call.1} parent=11 // pred_check_branch
          %376 = sbr.rel (%p374) target = $region56
        $region55: #{tpu_custom_call.1} parent=11 // pred_region
          _
        $region56: #{tpu_custom_call.1} parent=11 // pred_fallthru
          _
        // Predicated region
        $region57: #{tpu_custom_call.1} parent=11 // pred_check
          %p377 = pneg %p303
        $region58: #{tpu_custom_call.1} parent=11 // pred_check_branch
          %379 = sbr.rel (%p377) target = $region60
        $region59: #{tpu_custom_call.1} parent=11 // pred_region
          _
        $region60: #{tpu_custom_call.1} parent=11 // pred_fallthru
          _
      $region12: #{tpu_custom_call.1} parent=5 // pred_fallthru
        _
      %p380 = scmp.lt.s32.totalorder %s25, 2
      // Predicated region
      $region61: #{tpu_custom_call.1} parent=5 // pred_check
        %p381 = pneg %p380
      $region62: #{tpu_custom_call.1} parent=5 // pred_check_branch
        %383 = sbr.rel (%p381) target = $region64
      $region63: #{tpu_custom_call.1} parent=5 // pred_region
        // Predicated region
        $region65: #{tpu_custom_call.1} parent=63 // pred_check
          %p384 = pneg %p45
        $region66: #{tpu_custom_call.1} parent=63 // pred_check_branch
          %386 = sbr.rel (%p384) target = $region68
        $region67: #{tpu_custom_call.1} parent=63 // pred_region
          %s387 = sand.u32 %s35, 1
          %s388 = scalar_lea.sflag [#allocation3], %s387
          %s389 = sand.u32 %s35, 1
          %s390 = smul.addr %s389, 8
          %s391 = scalar_lea.vmem [#allocation2], %s390
          %393 = vsyncadd %s388, 0
          %s394 = smul.addr %s25, 8
          %s395 = scalar_lea.hbm %s0, %s394
          %s397 = sshll.u32 %s395, 4
          %s398 = int_to_ptr.hbm [resolvable:$true] %s397
          %s399 = sshll.u32 %s391, 4
          %s400 = int_to_ptr.vmem [resolvable:$true] %s399
          %402 = dma.hbm_to_vmem [thread:$0]  %s398, 128, %s400, %s388
        $region68: #{tpu_custom_call.1} parent=63 // pred_fallthru
          _
      $region64: #{tpu_custom_call.1} parent=5 // pred_fallthru
        _
      %p403 = scmp.le.s32.totalorder 1, %s25
      %p404 = scmp.lt.s32.totalorder %s25, 3
      %p405 = pnand %p403, %p404
      %p406 = pneg %p405
      // Predicated region
      $region69: #{tpu_custom_call.1} parent=5 // pred_check
        _
      $region70: #{tpu_custom_call.1} parent=5 // pred_check_branch
        %408 = sbr.rel (%p405) target = $region72
      $region71: #{tpu_custom_call.1} parent=5 // pred_region
        %s409 = ssub.s32 %s25, 1
        %s410 = sand.u32 %s38, 1
        %s411 = scalar_lea.sflag [#allocation3], %s410
        %s412 = sand.u32 %s38, 1
        %s413 = smul.addr %s412, 8
        %s414 = scalar_lea.vmem [#allocation2], %s413
        // Predicated region
        $region73: #{tpu_custom_call.1} parent=71 // pred_check
          %p415 = pneg %p51
        $region74: #{tpu_custom_call.1} parent=71 // pred_check_branch
          %417 = sbr.rel (%p415) target = $region76
        $region75: #{tpu_custom_call.1} parent=71 // pred_region
          %419 = dma.done %s411, 128
        $region76: #{tpu_custom_call.1} parent=71 // pred_fallthru
          _
        %s420 = sand.u32 %s38, 1
        %s421 = scalar_lea.sflag [#allocation3], %s420
        %s422 = sand.u32 %s38, 1
        %s423 = smul.addr %s422, 8
        %s424 = scalar_lea.vmem [#allocation2], %s423
        %p425 = pneg %p51
        %p426 = pneg %p48
        %p427 = pneg %p72
        %p428 = pneg %p69
        %p429 = pneg %p93
        %p430 = pneg %p90
        %p431 = pneg %p114
        %p432 = pneg %p111
        %p433 = pneg %p135
        %p434 = pneg %p132
        %p435 = pneg %p156
        %p436 = pneg %p153
        %p437 = pneg %p177
        %p438 = pneg %p174
        %p439 = pneg %p198
        %p440 = pneg %p195
        %p441 = pneg %p219
        %p442 = pneg %p216
        %p443 = pneg %p240
        %p444 = pneg %p237
        %p445 = pneg %p261
        %p446 = pneg %p258
        %p447 = pneg %p282
        %p448 = pneg %p279
        %p449 = pneg %p303
        %p450 = pneg %p300
        %p451 = pneg %p329
        %p452 = pneg %p326
        %s453 = sand.u32 %s316, 1
        %s454 = scalar_lea.sflag [#allocation4], %s453
        %s455 = sand.u32 %s316, 1
        %s456 = smul.addr %s455, 8
        %s457 = scalar_lea.vmem [#allocation5], %s456
        %v458 = vld [vmem:[%s414] sm:$0xff]
        %v459 = vld [vmem:[%s1] sm:$0xff]
        %v460 = vld [vmem:[%s1 + $0x8] sm:$0xff]
        %v461 = vld [vmem:[%s1 + $0x10] sm:$0xff]
        %v462 = vld [vmem:[%s1 + $0x18] sm:$0xff]
        %v463 = vld [vmem:[%s2] sm:$0x1]
        %v465 = vperm.slane %v463, 0
        %vm467 = vcmask 261120
        %v469 = vsel %vm467, %v458, 0
        %471 = vmatpush.msra.mxu0 0.0
        %472 = vmatpush.msra.mxu0 0.0
        %473 = vmatpush.msra.mxu0 0.0
        %474 = vmatpush.msra.mxu0 0.0
        %475 = vmatpush.msra.mxu0 0.0
        %476 = vmatpush.msra.mxu0 0.0
        %477 = vmatpush.msra.mxu0 0.0
        %478 = vmatpush.msra.mxu0 0.0
        %479 = vmatpush.msra.mxu0 0.0
        %480 = vmatpush.msra.mxu0 0.0
        %481 = vmatpush.msra.mxu0 0.0
        %482 = vmatpush.msra.mxu0 0.0
        %483 = vmatpush.msra.mxu0 %v462
        %484 = vmatpush.msra.mxu0 %v461
        %485 = vmatpush.msra.mxu0 %v460
        %486 = vmatpush.msra.mxu0 %v459
        %487 = vmatmul.f32.gmra.mxu0 %v469
        %v488 = vpop.f32.mrf.mxu0
        %v489 = vadd.f32 %v465, %v488
        %490 = vdwg.mxu0
        %492 = vrot.lane.b32.xlu0 %v489, 120
        %v493 = vpop.permute.xlu0 %492
        %495 = vrot.lane.b32.xlu0 %v489, 112
        %v496 = vpop.permute.xlu0 %495
        %498 = vrot.lane.b32.xlu0 %v489, 104
        %v499 = vpop.permute.xlu0 %498
        %v501 = vrot.slane %v496, 4
        %vm502 = vcmask 1047556
        %v503 = vsel %vm502, %v501, %v489
        %v504 = vrot.slane %v489, 4
        %v505 = vsel %vm502, %v496, %v504
        %v507 = vunpack.c.l.s4 1983009808
        %v508 = vunpack.c.0.s8 %v507
        %v509 = vperm.slane %v503, %v508
        %v511 = vunpack.c.l.s4 1983009808
        %v512 = vunpack.c.0.s8 %v511
        %v513 = vperm.slane %v505, %v512
        %v514 = vrot.slane %v499, 4
        %v515 = vsel %vm502, %v514, %v493
        %v516 = vrot.slane %v493, 4
        %v517 = vsel %vm502, %v499, %v516
        %v519 = vunpack.c.l.s4 1983009808
        %v520 = vunpack.c.0.s8 %v519
        %v521 = vperm.slane %v515, %v520
        %v523 = vunpack.c.l.s4 1983009808
        %v524 = vunpack.c.0.s8 %v523
        %v525 = vperm.slane %v517, %v524
        %v526 = vrot.slane %v521, 4
        %v527 = vsel %vm502, %v526, %v509
        %v528 = vrot.slane %v509, 4
        %v529 = vsel %vm502, %v521, %v528
        %v531 = vunpack.c.l.s4 1934713408
        %v532 = vunpack.c.0.s8 %v531
        %v533 = vperm.slane %v527, %v532
        %v535 = vunpack.c.l.s4 1934713408
        %v536 = vunpack.c.0.s8 %v535
        %v537 = vperm.slane %v529, %v536
        %v538 = vrot.slane %v525, 4
        %v539 = vsel %vm502, %v538, %v513
        %v540 = vrot.slane %v513, 4
        %v541 = vsel %vm502, %v525, %v540
        %v543 = vunpack.c.l.s4 1934713408
        %v544 = vunpack.c.0.s8 %v543
        %v545 = vperm.slane %v539, %v544
        %v547 = vunpack.c.l.s4 1934713408
        %v548 = vunpack.c.0.s8 %v547
        %v549 = vperm.slane %v541, %v548
        %v550 = vrot.slane %v533, 4
        %v551 = vsel %vm502, 0.0, %v550
        %v552 = vrot.slane %v537, 4
        %v553 = vsel %vm502, 0.0, %v552
        %v554 = vrot.slane %v545, 4
        %v555 = vsel %vm502, 0.0, %v554
        %v556 = vrot.slane %v549, 4
        %v557 = vsel %vm502, 0.0, %v556
        %v558 = vsel %vm502, %v552, %v533
        %v560 = vunpack.c.l.s4 1983009808
        %v561 = vunpack.c.0.s8 %v560
        %v562 = vperm.slane %v558, %v561
        %v563 = vrot.slane %v553, 4
        %v564 = vsel %vm502, %v563, %v551
        %v566 = vunpack.c.l.s4 1983009808
        %v567 = vunpack.c.0.s8 %v566
        %v568 = vperm.slane %v564, %v567
        %v569 = vsel %vm502, %v556, %v545
        %v571 = vunpack.c.l.s4 1983009808
        %v572 = vunpack.c.0.s8 %v571
        %v573 = vperm.slane %v569, %v572
        %v574 = vrot.slane %v557, 4
        %v575 = vsel %vm502, %v574, %v555
        %v577 = vunpack.c.l.s4 1983009808
        %v578 = vunpack.c.0.s8 %v577
        %v579 = vperm.slane %v575, %v578
        %v580 = vrot.slane %v568, 4
        %v581 = vsel %vm502, %v580, %v562
        %v582 = vrot.slane %v562, 4
        %v583 = vsel %vm502, %v568, %v582
        %v585 = vunpack.c.l.s4 1934713408
        %v586 = vunpack.c.0.s8 %v585
        %v587 = vperm.slane %v581, %v586
        %v589 = vunpack.c.l.s4 1934713408
        %v590 = vunpack.c.0.s8 %v589
        %v591 = vperm.slane %v583, %v590
        %v592 = vrot.slane %v579, 4
        %v593 = vsel %vm502, %v592, %v573
        %v594 = vrot.slane %v573, 4
        %v595 = vsel %vm502, %v579, %v594
        %v597 = vunpack.c.l.s4 1934713408
        %v598 = vunpack.c.0.s8 %v597
        %v599 = vperm.slane %v593, %v598
        %v601 = vunpack.c.l.s4 1934713408
        %v602 = vunpack.c.0.s8 %v601
        %v603 = vperm.slane %v595, %v602
        %v604 = vrot.slane %v599, 4
        %v605 = vsel %vm502, %v604, %v587
        %v606 = vrot.slane %v587, 4
        %v607 = vsel %vm502, %v599, %v606
        %v608 = vrot.slane %v603, 4
        %v609 = vsel %vm502, %v608, %v591
        %v610 = vrot.slane %v591, 4
        %v611 = vsel %vm502, %v603, %v610
        %612 = vrot.lane.b32.xlu0 %v489, 96
        %v613 = vpop.permute.xlu0 %612
        %614 = vrot.lane.b32.xlu0 %v493, 96
        %v615 = vpop.permute.xlu0 %614
        %616 = vrot.lane.b32.xlu0 %v496, 96
        %v617 = vpop.permute.xlu0 %616
        %618 = vrot.lane.b32.xlu0 %v499, 96
        %v619 = vpop.permute.xlu0 %618
        %v624 = vrot.slane %v617, 4
        %v625 = vsel %vm502, %v624, %v613
        %v626 = vrot.slane %v613, 4
        %v627 = vsel %vm502, %v617, %v626
        %v629 = vunpack.c.l.s4 1983009808
        %v630 = vunpack.c.0.s8 %v629
        %v631 = vperm.slane %v625, %v630
        %v633 = vunpack.c.l.s4 1983009808
        %v634 = vunpack.c.0.s8 %v633
        %v635 = vperm.slane %v627, %v634
        %v636 = vrot.slane %v619, 4
        %v637 = vsel %vm502, %v636, %v615
        %v638 = vrot.slane %v615, 4
        %v639 = vsel %vm502, %v619, %v638
        %v641 = vunpack.c.l.s4 1983009808
        %v642 = vunpack.c.0.s8 %v641
        %v643 = vperm.slane %v637, %v642
        %v645 = vunpack.c.l.s4 1983009808
        %v646 = vunpack.c.0.s8 %v645
        %v647 = vperm.slane %v639, %v646
        %v648 = vrot.slane %v643, 4
        %v649 = vsel %vm502, %v648, %v631
        %v650 = vrot.slane %v631, 4
        %v651 = vsel %vm502, %v643, %v650
        %v653 = vunpack.c.l.s4 1934713408
        %v654 = vunpack.c.0.s8 %v653
        %v655 = vperm.slane %v649, %v654
        %v657 = vunpack.c.l.s4 1934713408
        %v658 = vunpack.c.0.s8 %v657
        %v659 = vperm.slane %v651, %v658
        %v660 = vrot.slane %v647, 4
        %v661 = vsel %vm502, %v660, %v635
        %v662 = vrot.slane %v635, 4
        %v663 = vsel %vm502, %v647, %v662
        %v665 = vunpack.c.l.s4 1934713408
        %v666 = vunpack.c.0.s8 %v665
        %v667 = vperm.slane %v661, %v666
        %v669 = vunpack.c.l.s4 1934713408
        %v670 = vunpack.c.0.s8 %v669
        %v671 = vperm.slane %v663, %v670
        %v672 = vrot.slane %v655, 4
        %v673 = vsel %vm502, 0.0, %v672
        %v674 = vrot.slane %v659, 4
        %v675 = vsel %vm502, 0.0, %v674
        %v676 = vrot.slane %v667, 4
        %v677 = vsel %vm502, 0.0, %v676
        %v678 = vrot.slane %v671, 4
        %v679 = vsel %vm502, 0.0, %v678
        %v680 = vsel %vm502, %v674, %v655
        %v682 = vunpack.c.l.s4 1983009808
        %v683 = vunpack.c.0.s8 %v682
        %v684 = vperm.slane %v680, %v683
        %v685 = vrot.slane %v675, 4
        %v686 = vsel %vm502, %v685, %v673
        %v688 = vunpack.c.l.s4 1983009808
        %v689 = vunpack.c.0.s8 %v688
        %v690 = vperm.slane %v686, %v689
        %v691 = vsel %vm502, %v678, %v667
        %v693 = vunpack.c.l.s4 1983009808
        %v694 = vunpack.c.0.s8 %v693
        %v695 = vperm.slane %v691, %v694
        %v696 = vrot.slane %v679, 4
        %v697 = vsel %vm502, %v696, %v677
        %v699 = vunpack.c.l.s4 1983009808
        %v700 = vunpack.c.0.s8 %v699
        %v701 = vperm.slane %v697, %v700
        %v702 = vrot.slane %v690, 4
        %v703 = vsel %vm502, %v702, %v684
        %v704 = vrot.slane %v684, 4
        %v705 = vsel %vm502, %v690, %v704
        %v707 = vunpack.c.l.s4 1934713408
        %v708 = vunpack.c.0.s8 %v707
        %v709 = vperm.slane %v703, %v708
        %v711 = vunpack.c.l.s4 1934713408
        %v712 = vunpack.c.0.s8 %v711
        %v713 = vperm.slane %v705, %v712
        %v714 = vrot.slane %v701, 4
        %v715 = vsel %vm502, %v714, %v695
        %v716 = vrot.slane %v695, 4
        %v717 = vsel %vm502, %v701, %v716
        %v719 = vunpack.c.l.s4 1934713408
        %v720 = vunpack.c.0.s8 %v719
        %v721 = vperm.slane %v715, %v720
        %v723 = vunpack.c.l.s4 1934713408
        %v724 = vunpack.c.0.s8 %v723
        %v725 = vperm.slane %v717, %v724
        %v726 = vrot.slane %v721, 4
        %v727 = vsel %vm502, %v726, %v709
        %v728 = vrot.slane %v709, 4
        %v729 = vsel %vm502, %v721, %v728
        %v730 = vrot.slane %v725, 4
        %v731 = vsel %vm502, %v730, %v713
        %v732 = vrot.slane %v713, 4
        %v733 = vsel %vm502, %v725, %v732
        %734 = vrot.lane.b32.xlu0 %v489, 64
        %v735 = vpop.permute.xlu0 %734
        %736 = vrot.lane.b32.xlu0 %v493, 64
        %v737 = vpop.permute.xlu0 %736
        %738 = vrot.lane.b32.xlu0 %v496, 64
        %v739 = vpop.permute.xlu0 %738
        %740 = vrot.lane.b32.xlu0 %v499, 64
        %v741 = vpop.permute.xlu0 %740
        %v746 = vrot.slane %v739, 4
        %v747 = vsel %vm502, %v746, %v735
        %v748 = vrot.slane %v735, 4
        %v749 = vsel %vm502, %v739, %v748
        %v751 = vunpack.c.l.s4 1983009808
        %v752 = vunpack.c.0.s8 %v751
        %v753 = vperm.slane %v747, %v752
        %v755 = vunpack.c.l.s4 1983009808
        %v756 = vunpack.c.0.s8 %v755
        %v757 = vperm.slane %v749, %v756
        %v758 = vrot.slane %v741, 4
        %v759 = vsel %vm502, %v758, %v737
        %v760 = vrot.slane %v737, 4
        %v761 = vsel %vm502, %v741, %v760
        %v763 = vunpack.c.l.s4 1983009808
        %v764 = vunpack.c.0.s8 %v763
        %v765 = vperm.slane %v759, %v764
        %v767 = vunpack.c.l.s4 1983009808
        %v768 = vunpack.c.0.s8 %v767
        %v769 = vperm.slane %v761, %v768
        %v770 = vrot.slane %v765, 4
        %v771 = vsel %vm502, %v770, %v753
        %v772 = vrot.slane %v753, 4
        %v773 = vsel %vm502, %v765, %v772
        %v775 = vunpack.c.l.s4 1934713408
        %v776 = vunpack.c.0.s8 %v775
        %v777 = vperm.slane %v771, %v776
        %v779 = vunpack.c.l.s4 1934713408
        %v780 = vunpack.c.0.s8 %v779
        %v781 = vperm.slane %v773, %v780
        %v782 = vrot.slane %v769, 4
        %v783 = vsel %vm502, %v782, %v757
        %v784 = vrot.slane %v757, 4
        %v785 = vsel %vm502, %v769, %v784
        %v787 = vunpack.c.l.s4 1934713408
        %v788 = vunpack.c.0.s8 %v787
        %v789 = vperm.slane %v783, %v788
        %v791 = vunpack.c.l.s4 1934713408
        %v792 = vunpack.c.0.s8 %v791
        %v793 = vperm.slane %v785, %v792
        %v794 = vrot.slane %v777, 4
        %v795 = vsel %vm502, 0.0, %v794
        %v796 = vrot.slane %v781, 4
        %v797 = vsel %vm502, 0.0, %v796
        %v798 = vrot.slane %v789, 4
        %v799 = vsel %vm502, 0.0, %v798
        %v800 = vrot.slane %v793, 4
        %v801 = vsel %vm502, 0.0, %v800
        %v802 = vsel %vm502, %v796, %v777
        %v804 = vunpack.c.l.s4 1983009808
        %v805 = vunpack.c.0.s8 %v804
        %v806 = vperm.slane %v802, %v805
        %v807 = vrot.slane %v797, 4
        %v808 = vsel %vm502, %v807, %v795
        %v810 = vunpack.c.l.s4 1983009808
        %v811 = vunpack.c.0.s8 %v810
        %v812 = vperm.slane %v808, %v811
        %v813 = vsel %vm502, %v800, %v789
        %v815 = vunpack.c.l.s4 1983009808
        %v816 = vunpack.c.0.s8 %v815
        %v817 = vperm.slane %v813, %v816
        %v818 = vrot.slane %v801, 4
        %v819 = vsel %vm502, %v818, %v799
        %v821 = vunpack.c.l.s4 1983009808
        %v822 = vunpack.c.0.s8 %v821
        %v823 = vperm.slane %v819, %v822
        %v824 = vrot.slane %v812, 4
        %v825 = vsel %vm502, %v824, %v806
        %v826 = vrot.slane %v806, 4
        %v827 = vsel %vm502, %v812, %v826
        %v829 = vunpack.c.l.s4 1934713408
        %v830 = vunpack.c.0.s8 %v829
        %v831 = vperm.slane %v825, %v830
        %v833 = vunpack.c.l.s4 1934713408
        %v834 = vunpack.c.0.s8 %v833
        %v835 = vperm.slane %v827, %v834
        %v836 = vrot.slane %v823, 4
        %v837 = vsel %vm502, %v836, %v817
        %v838 = vrot.slane %v817, 4
        %v839 = vsel %vm502, %v823, %v838
        %v841 = vunpack.c.l.s4 1934713408
        %v842 = vunpack.c.0.s8 %v841
        %v843 = vperm.slane %v837, %v842
        %v845 = vunpack.c.l.s4 1934713408
        %v846 = vunpack.c.0.s8 %v845
        %v847 = vperm.slane %v839, %v846
        %v848 = vrot.slane %v843, 4
        %v849 = vsel %vm502, %v848, %v831
        %v850 = vrot.slane %v831, 4
        %v851 = vsel %vm502, %v843, %v850
        %v852 = vrot.slane %v847, 4
        %v853 = vsel %vm502, %v852, %v835
        %v854 = vrot.slane %v835, 4
        %v855 = vsel %vm502, %v847, %v854
        %vm856 = vcmask 64512
        %v858 = vsel %vm856, %v605, 0
        %v861 = vsel %vm856, %v727, 0
        %863 = vmatpush.xpose.msra.mxu0 0.0
        %864 = vmatpush.xpose.msra.mxu0 0.0
        %865 = vmatpush.xpose.msra.mxu0 0.0
        %866 = vmatpush.xpose.msra.mxu0 0.0
        %867 = vmatpush.xpose.msra.mxu0 0.0
        %868 = vmatpush.xpose.msra.mxu0 0.0
        %869 = vmatpush.xpose.msra.mxu0 0.0
        %870 = vmatpush.xpose.msra.mxu0 0.0
        %871 = vmatpush.xpose.msra.mxu0 0.0
        %872 = vmatpush.xpose.msra.mxu0 0.0
        %873 = vmatpush.xpose.msra.mxu0 0.0
        %874 = vmatpush.xpose.msra.mxu0 0.0
        %875 = vmatpush.xpose.msra.mxu0 0.0
        %876 = vmatpush.xpose.msra.mxu0 0.0
        %877 = vmatpush.xpose.msra.mxu0 0.0
        %878 = vmatpush.xpose.msra.mxu0 %v861
        %879 = vmatmul.f32.gmra.mxu0 %v858
        %v880 = vpop.f32.mrf.mxu0
        %v881 = vadd.f32 0.0, %v880
        %882 = vdwg.mxu0
        %v884 = vsel %vm856, %v607, 0
        %v887 = vsel %vm856, %v729, 0
        %889 = vmatpush.xpose.msra.mxu0 0.0
        %890 = vmatpush.xpose.msra.mxu0 0.0
        %891 = vmatpush.xpose.msra.mxu0 0.0
        %892 = vmatpush.xpose.msra.mxu0 0.0
        %893 = vmatpush.xpose.msra.mxu0 0.0
        %894 = vmatpush.xpose.msra.mxu0 0.0
        %895 = vmatpush.xpose.msra.mxu0 0.0
        %896 = vmatpush.xpose.msra.mxu0 0.0
        %897 = vmatpush.xpose.msra.mxu0 0.0
        %898 = vmatpush.xpose.msra.mxu0 0.0
        %899 = vmatpush.xpose.msra.mxu0 0.0
        %900 = vmatpush.xpose.msra.mxu0 0.0
        %901 = vmatpush.xpose.msra.mxu0 0.0
        %902 = vmatpush.xpose.msra.mxu0 0.0
        %903 = vmatpush.xpose.msra.mxu0 0.0
        %904 = vmatpush.xpose.msra.mxu0 %v887
        %905 = vmatmul.f32.gmra.mxu0 %v884
        %v906 = vpop.f32.mrf.mxu0
        %v907 = vadd.f32 0.0, %v906
        %908 = vdwg.mxu0
        %v910 = vsel %vm856, %v609, 0
        %v913 = vsel %vm856, %v731, 0
        %915 = vmatpush.xpose.msra.mxu0 0.0
        %916 = vmatpush.xpose.msra.mxu0 0.0
        %917 = vmatpush.xpose.msra.mxu0 0.0
        %918 = vmatpush.xpose.msra.mxu0 0.0
        %919 = vmatpush.xpose.msra.mxu0 0.0
        %920 = vmatpush.xpose.msra.mxu0 0.0
        %921 = vmatpush.xpose.msra.mxu0 0.0
        %922 = vmatpush.xpose.msra.mxu0 0.0
        %923 = vmatpush.xpose.msra.mxu0 0.0
        %924 = vmatpush.xpose.msra.mxu0 0.0
        %925 = vmatpush.xpose.msra.mxu0 0.0
        %926 = vmatpush.xpose.msra.mxu0 0.0
        %927 = vmatpush.xpose.msra.mxu0 0.0
        %928 = vmatpush.xpose.msra.mxu0 0.0
        %929 = vmatpush.xpose.msra.mxu0 0.0
        %930 = vmatpush.xpose.msra.mxu0 %v913
        %931 = vmatmul.f32.gmra.mxu0 %v910
        %v932 = vpop.f32.mrf.mxu0
        %v933 = vadd.f32 0.0, %v932
        %934 = vdwg.mxu0
        %v936 = vsel %vm856, %v611, 0
        %v939 = vsel %vm856, %v733, 0
        %941 = vmatpush.xpose.msra.mxu0 0.0
        %942 = vmatpush.xpose.msra.mxu0 0.0
        %943 = vmatpush.xpose.msra.mxu0 0.0
        %944 = vmatpush.xpose.msra.mxu0 0.0
        %945 = vmatpush.xpose.msra.mxu0 0.0
        %946 = vmatpush.xpose.msra.mxu0 0.0
        %947 = vmatpush.xpose.msra.mxu0 0.0
        %948 = vmatpush.xpose.msra.mxu0 0.0
        %949 = vmatpush.xpose.msra.mxu0 0.0
        %950 = vmatpush.xpose.msra.mxu0 0.0
        %951 = vmatpush.xpose.msra.mxu0 0.0
        %952 = vmatpush.xpose.msra.mxu0 0.0
        %953 = vmatpush.xpose.msra.mxu0 0.0
        %954 = vmatpush.xpose.msra.mxu0 0.0
        %955 = vmatpush.xpose.msra.mxu0 0.0
        %956 = vmatpush.xpose.msra.mxu0 %v939
        %957 = vmatmul.f32.gmra.mxu0 %v936
        %v958 = vpop.f32.mrf.mxu0
        %v959 = vadd.f32 0.0, %v958
        %960 = vdwg.mxu0
        %v961 = vsel %vm856, %v881, -inf
        %962 = vmax.xlane.f32.xlu0 %v961
        %v963 = vpop.xlane.xlu0 %962
        %v964 = vsel %vm856, %v907, -inf
        %965 = vmax.xlane.f32.xlu0 %v964
        %v966 = vpop.xlane.xlu0 %965
        %v967 = vsel %vm856, %v933, -inf
        %968 = vmax.xlane.f32.xlu0 %v967
        %v969 = vpop.xlane.xlu0 %968
        %v970 = vsel %vm856, %v959, -inf
        %971 = vmax.xlane.f32.xlu0 %v970
        %v972 = vpop.xlane.xlu0 %971
        %v973 = vsub.f32 %v881, %v963
        %v974 = vsub.f32 %v907, %v966
        %v975 = vsub.f32 %v933, %v969
        %v976 = vsub.f32 %v959, %v972
        %v977 = vmul.f32 %v973, 1.442695
        %v978 = vpow.pop %v977
        %v979 = vmul.f32 %v974, 1.442695
        %v980 = vpow.pop %v979
        %v981 = vmul.f32 %v975, 1.442695
        %v982 = vpow.pop %v981
        %v983 = vmul.f32 %v976, 1.442695
        %v984 = vpow.pop %v983
        %v985 = vsel %vm856, %v978, 0.0
        %986 = vadd.xlane.f32.xlu0 %v985
        %v987 = vpop.xlane.xlu0 %986
        %v988 = vsel %vm856, %v980, 0.0
        %989 = vadd.xlane.f32.xlu0 %v988
        %v990 = vpop.xlane.xlu0 %989
        %v991 = vsel %vm856, %v982, 0.0
        %992 = vadd.xlane.f32.xlu0 %v991
        %v993 = vpop.xlane.xlu0 %992
        %v994 = vsel %vm856, %v984, 0.0
        %995 = vadd.xlane.f32.xlu0 %v994
        %v996 = vpop.xlane.xlu0 %995
        %v998 = vsel %vm856, %v978, 0
        %1000 = vmatpush.msra.mxu0 0.0
        %1001 = vmatpush.msra.mxu0 0.0
        %1002 = vmatpush.msra.mxu0 0.0
        %1003 = vmatpush.msra.mxu0 0.0
        %1004 = vmatpush.msra.mxu0 0.0
        %1005 = vmatpush.msra.mxu0 0.0
        %1006 = vmatpush.msra.mxu0 0.0
        %1007 = vmatpush.msra.mxu0 0.0
        %1008 = vmatpush.msra.mxu0 0.0
        %1009 = vmatpush.msra.mxu0 0.0
        %1010 = vmatpush.msra.mxu0 0.0
        %1011 = vmatpush.msra.mxu0 0.0
        %1012 = vmatpush.msra.mxu0 0.0
        %1013 = vmatpush.msra.mxu0 0.0
        %1014 = vmatpush.msra.mxu0 0.0
        %1015 = vmatpush.msra.mxu0 %v849
        %1016 = vmatmul.f32.gmra.mxu0 %v998
        %v1017 = vpop.f32.mrf.mxu0
        %v1018 = vadd.f32 0.0, %v1017
        %1019 = vdwg.mxu0
        %v1021 = vsel %vm856, %v980, 0
        %1023 = vmatpush.msra.mxu0 0.0
        %1024 = vmatpush.msra.mxu0 0.0
        %1025 = vmatpush.msra.mxu0 0.0
        %1026 = vmatpush.msra.mxu0 0.0
        %1027 = vmatpush.msra.mxu0 0.0
        %1028 = vmatpush.msra.mxu0 0.0
        %1029 = vmatpush.msra.mxu0 0.0
        %1030 = vmatpush.msra.mxu0 0.0
        %1031 = vmatpush.msra.mxu0 0.0
        %1032 = vmatpush.msra.mxu0 0.0
        %1033 = vmatpush.msra.mxu0 0.0
        %1034 = vmatpush.msra.mxu0 0.0
        %1035 = vmatpush.msra.mxu0 0.0
        %1036 = vmatpush.msra.mxu0 0.0
        %1037 = vmatpush.msra.mxu0 0.0
        %1038 = vmatpush.msra.mxu0 %v851
        %1039 = vmatmul.f32.gmra.mxu0 %v1021
        %v1040 = vpop.f32.mrf.mxu0
        %v1041 = vadd.f32 0.0, %v1040
        %1042 = vdwg.mxu0
        %v1044 = vsel %vm856, %v982, 0
        %1046 = vmatpush.msra.mxu0 0.0
        %1047 = vmatpush.msra.mxu0 0.0
        %1048 = vmatpush.msra.mxu0 0.0
        %1049 = vmatpush.msra.mxu0 0.0
        %1050 = vmatpush.msra.mxu0 0.0
        %1051 = vmatpush.msra.mxu0 0.0
        %1052 = vmatpush.msra.mxu0 0.0
        %1053 = vmatpush.msra.mxu0 0.0
        %1054 = vmatpush.msra.mxu0 0.0
        %1055 = vmatpush.msra.mxu0 0.0
        %1056 = vmatpush.msra.mxu0 0.0
        %1057 = vmatpush.msra.mxu0 0.0
        %1058 = vmatpush.msra.mxu0 0.0
        %1059 = vmatpush.msra.mxu0 0.0
        %1060 = vmatpush.msra.mxu0 0.0
        %1061 = vmatpush.msra.mxu0 %v853
        %1062 = vmatmul.f32.gmra.mxu0 %v1044
        %v1063 = vpop.f32.mrf.mxu0
        %v1064 = vadd.f32 0.0, %v1063
        %1065 = vdwg.mxu0
        %v1067 = vsel %vm856, %v984, 0
        %1069 = vmatpush.msra.mxu0 0.0
        %1070 = vmatpush.msra.mxu0 0.0
        %1071 = vmatpush.msra.mxu0 0.0
        %1072 = vmatpush.msra.mxu0 0.0
        %1073 = vmatpush.msra.mxu0 0.0
        %1074 = vmatpush.msra.mxu0 0.0
        %1075 = vmatpush.msra.mxu0 0.0
        %1076 = vmatpush.msra.mxu0 0.0
        %1077 = vmatpush.msra.mxu0 0.0
        %1078 = vmatpush.msra.mxu0 0.0
        %1079 = vmatpush.msra.mxu0 0.0
        %1080 = vmatpush.msra.mxu0 0.0
        %1081 = vmatpush.msra.mxu0 0.0
        %1082 = vmatpush.msra.mxu0 0.0
        %1083 = vmatpush.msra.mxu0 0.0
        %1084 = vmatpush.msra.mxu0 %v855
        %1085 = vmatmul.f32.gmra.mxu0 %v1067
        %v1086 = vpop.f32.mrf.mxu0
        %v1087 = vadd.f32 0.0, %v1086
        %1088 = vdwg.mxu0
        %v1089 = vrcp.pop %v987
        %v1090 = vmul.f32 %v987, %v1089
        %v1091 = vsub.f32 1.0, %v1090
        %v1092 = vmul.f32 %v1089, %v1091
        %v1093 = vadd.f32 %v1089, %v1092
        %vm1094 = vweird.f32 %v987
        %vm1095 = vweird.f32 %v1089
        %vm1096 = vmor %vm1094, %vm1095
        %v1097 = vsel %vm1096, %v1089, %v1093
        %v1098 = vand.u32 2147483647, %v987
        %vm1099 = vcmp.eq.f32.partialorder %v1098, 8.507059e+37
        %v1100 = vand.u32 %v987, 2147483648
        %v1101 = vor.u32 1.1754944e-38, %v1100
        %v1102 = vsel %vm1099, %v1101, %v1097
        %v1103 = vrcp.pop %v990
        %v1104 = vmul.f32 %v990, %v1103
        %v1105 = vsub.f32 1.0, %v1104
        %v1106 = vmul.f32 %v1103, %v1105
        %v1107 = vadd.f32 %v1103, %v1106
        %vm1108 = vweird.f32 %v990
        %vm1109 = vweird.f32 %v1103
        %vm1110 = vmor %vm1108, %vm1109
        %v1111 = vsel %vm1110, %v1103, %v1107
        %v1112 = vand.u32 2147483647, %v990
        %vm1113 = vcmp.eq.f32.partialorder %v1112, 8.507059e+37
        %v1114 = vand.u32 %v990, 2147483648
        %v1115 = vor.u32 1.1754944e-38, %v1114
        %v1116 = vsel %vm1113, %v1115, %v1111
        %v1117 = vrcp.pop %v993
        %v1118 = vmul.f32 %v993, %v1117
        %v1119 = vsub.f32 1.0, %v1118
        %v1120 = vmul.f32 %v1117, %v1119
        %v1121 = vadd.f32 %v1117, %v1120
        %vm1122 = vweird.f32 %v993
        %vm1123 = vweird.f32 %v1117
        %vm1124 = vmor %vm1122, %vm1123
        %v1125 = vsel %vm1124, %v1117, %v1121
        %v1126 = vand.u32 2147483647, %v993
        %vm1127 = vcmp.eq.f32.partialorder %v1126, 8.507059e+37
        %v1128 = vand.u32 %v993, 2147483648
        %v1129 = vor.u32 1.1754944e-38, %v1128
        %v1130 = vsel %vm1127, %v1129, %v1125
        %v1131 = vrcp.pop %v996
        %v1132 = vmul.f32 %v996, %v1131
        %v1133 = vsub.f32 1.0, %v1132
        %v1134 = vmul.f32 %v1131, %v1133
        %v1135 = vadd.f32 %v1131, %v1134
        %vm1136 = vweird.f32 %v996
        %vm1137 = vweird.f32 %v1131
        %vm1138 = vmor %vm1136, %vm1137
        %v1139 = vsel %vm1138, %v1131, %v1135
        %v1140 = vand.u32 2147483647, %v996
        %vm1141 = vcmp.eq.f32.partialorder %v1140, 8.507059e+37
        %v1142 = vand.u32 %v996, 2147483648
        %v1143 = vor.u32 1.1754944e-38, %v1142
        %v1144 = vsel %vm1141, %v1143, %v1139
        %v1145 = vmul.f32 %v1018, %v1102
        %v1146 = vmul.f32 %v1041, %v1116
        %v1147 = vmul.f32 %v1064, %v1130
        %v1148 = vmul.f32 %v1087, %v1144
        %v1149 = vrot.slane %v1147, 4
        %v1150 = vsel %vm502, %v1149, %v1145
        %v1151 = vrot.slane %v1145, 4
        %v1152 = vsel %vm502, %v1147, %v1151
        %v1154 = vunpack.c.l.s4 1983009808
        %v1155 = vunpack.c.0.s8 %v1154
        %v1156 = vperm.slane %v1150, %v1155
        %v1158 = vunpack.c.l.s4 1983009808
        %v1159 = vunpack.c.0.s8 %v1158
        %v1160 = vperm.slane %v1152, %v1159
        %v1161 = vrot.slane %v1148, 4
        %v1162 = vsel %vm502, %v1161, %v1146
        %v1163 = vrot.slane %v1146, 4
        %v1164 = vsel %vm502, %v1148, %v1163
        %v1166 = vunpack.c.l.s4 1983009808
        %v1167 = vunpack.c.0.s8 %v1166
        %v1168 = vperm.slane %v1162, %v1167
        %v1170 = vunpack.c.l.s4 1983009808
        %v1171 = vunpack.c.0.s8 %v1170
        %v1172 = vperm.slane %v1164, %v1171
        %v1173 = vrot.slane %v1168, 4
        %v1174 = vsel %vm502, %v1173, %v1156
        %v1175 = vrot.slane %v1156, 4
        %v1176 = vsel %vm502, %v1168, %v1175
        %v1178 = vunpack.c.l.s4 1934713408
        %v1179 = vunpack.c.0.s8 %v1178
        %v1180 = vperm.slane %v1174, %v1179
        %v1182 = vunpack.c.l.s4 1934713408
        %v1183 = vunpack.c.0.s8 %v1182
        %v1184 = vperm.slane %v1176, %v1183
        %v1185 = vrot.slane %v1172, 4
        %v1186 = vsel %vm502, %v1185, %v1160
        %v1187 = vrot.slane %v1160, 4
        %v1188 = vsel %vm502, %v1172, %v1187
        %v1190 = vunpack.c.l.s4 1934713408
        %v1191 = vunpack.c.0.s8 %v1190
        %v1192 = vperm.slane %v1186, %v1191
        %v1194 = vunpack.c.l.s4 1934713408
        %v1195 = vunpack.c.0.s8 %v1194
        %v1196 = vperm.slane %v1188, %v1195
        %v1197 = vrot.slane %v1180, 4
        %v1198 = vsel %vm502, 0.0, %v1197
        %v1199 = vrot.slane %v1184, 4
        %v1200 = vsel %vm502, 0.0, %v1199
        %v1201 = vrot.slane %v1192, 4
        %v1202 = vsel %vm502, 0.0, %v1201
        %v1203 = vrot.slane %v1196, 4
        %v1204 = vsel %vm502, 0.0, %v1203
        %v1205 = vsel %vm502, %v1199, %v1180
        %v1207 = vunpack.c.l.s4 1983009808
        %v1208 = vunpack.c.0.s8 %v1207
        %v1209 = vperm.slane %v1205, %v1208
        %v1210 = vrot.slane %v1200, 4
        %v1211 = vsel %vm502, %v1210, %v1198
        %v1213 = vunpack.c.l.s4 1983009808
        %v1214 = vunpack.c.0.s8 %v1213
        %v1215 = vperm.slane %v1211, %v1214
        %v1216 = vsel %vm502, %v1203, %v1192
        %v1218 = vunpack.c.l.s4 1983009808
        %v1219 = vunpack.c.0.s8 %v1218
        %v1220 = vperm.slane %v1216, %v1219
        %v1221 = vrot.slane %v1204, 4
        %v1222 = vsel %vm502, %v1221, %v1202
        %v1224 = vunpack.c.l.s4 1983009808
        %v1225 = vunpack.c.0.s8 %v1224
        %v1226 = vperm.slane %v1222, %v1225
        %v1227 = vrot.slane %v1215, 4
        %v1228 = vsel %vm502, %v1227, %v1209
        %v1229 = vrot.slane %v1209, 4
        %v1230 = vsel %vm502, %v1215, %v1229
        %v1232 = vunpack.c.l.s4 1934713408
        %v1233 = vunpack.c.0.s8 %v1232
        %v1234 = vperm.slane %v1228, %v1233
        %v1236 = vunpack.c.l.s4 1934713408
        %v1237 = vunpack.c.0.s8 %v1236
        %v1238 = vperm.slane %v1230, %v1237
        %v1239 = vrot.slane %v1226, 4
        %v1240 = vsel %vm502, %v1239, %v1220
        %v1241 = vrot.slane %v1220, 4
        %v1242 = vsel %vm502, %v1226, %v1241
        %v1244 = vunpack.c.l.s4 1934713408
        %v1245 = vunpack.c.0.s8 %v1244
        %v1246 = vperm.slane %v1240, %v1245
        %v1248 = vunpack.c.l.s4 1934713408
        %v1249 = vunpack.c.0.s8 %v1248
        %v1250 = vperm.slane %v1242, %v1249
        %v1251 = vrot.slane %v1246, 4
        %v1252 = vsel %vm502, %v1251, %v1234
        %v1253 = vrot.slane %v1234, 4
        %v1254 = vsel %vm502, %v1246, %v1253
        %v1255 = vrot.slane %v1250, 4
        %v1256 = vsel %vm502, %v1255, %v1238
        %v1257 = vrot.slane %v1238, 4
        %v1258 = vsel %vm502, %v1250, %v1257
        %1260 = vrot.lane.b32.xlu0 %v1254, 8
        %v1261 = vpop.permute.xlu0 %1260
        %1264 = vrot.lane.b32.xlu0 %v1256, 16
        %v1265 = vpop.permute.xlu0 %1264
        %1268 = vrot.lane.b32.xlu0 %v1258, 24
        %v1269 = vpop.permute.xlu0 %1268
        %v1271 = vsel %vm856, %v1252, %v1261
        %vm1272 = vcmask 130048
        %v1273 = vsel %vm1272, %v1271, %v1265
        %vm1274 = vcmask 195584
        %v1275 = vsel %vm1274, %v1273, %v1269
        %v1276 = vld [vmem:[%s3] sm:$0xff]
        %v1277 = vld [vmem:[%s3 + $0x8] sm:$0xff]
        %v1278 = vld [vmem:[%s3 + $0x10] sm:$0xff]
        %v1279 = vld [vmem:[%s3 + $0x18] sm:$0xff]
        %v1280 = vld [vmem:[%s4] sm:$0x1]
        %v1282 = vperm.slane %v1280, 0
        %v1285 = vsel %vm467, %v1275, 0
        %1287 = vmatpush.msra.mxu0 0.0
        %1288 = vmatpush.msra.mxu0 0.0
        %1289 = vmatpush.msra.mxu0 0.0
        %1290 = vmatpush.msra.mxu0 0.0
        %1291 = vmatpush.msra.mxu0 0.0
        %1292 = vmatpush.msra.mxu0 0.0
        %1293 = vmatpush.msra.mxu0 0.0
        %1294 = vmatpush.msra.mxu0 0.0
        %1295 = vmatpush.msra.mxu0 0.0
        %1296 = vmatpush.msra.mxu0 0.0
        %1297 = vmatpush.msra.mxu0 0.0
        %1298 = vmatpush.msra.mxu0 0.0
        %1299 = vmatpush.msra.mxu0 %v1279
        %1300 = vmatpush.msra.mxu0 %v1278
        %1301 = vmatpush.msra.mxu0 %v1277
        %1302 = vmatpush.msra.mxu0 %v1276
        %1303 = vmatmul.f32.gmra.mxu0 %v1285
        %v1304 = vpop.f32.mrf.mxu0
        %v1305 = vadd.f32 %v1282, %v1304
        %1306 = vdwg.mxu0
        %v1307 = vadd.f32 %v458, %v1305
        %v1308 = vld [vmem:[%s5] sm:$0x1]
        %v1309 = vld [vmem:[%s6] sm:$0x1]
        %v1310 = vsel %vm467, %v1307, 0.0
        %1311 = vadd.xlane.f32.xlu0 %v1310
        %v1312 = vpop.xlane.xlu0 %1311
        %v1313 = vmul.f32 %v1307, %v1307
        %v1314 = vsel %vm467, %v1313, 0.0
        %1315 = vadd.xlane.f32.xlu0 %v1314
        %v1316 = vpop.xlane.xlu0 %1315
        %v1317 = vmul.f32 %v1312, 0.03125
        %v1318 = vmul.f32 %v1316, 0.03125
        %v1319 = vmul.f32 %v1317, %v1317
        %v1320 = vsub.f32 %v1318, %v1319
        %v1321 = vmax.f32 %v1320, 0.0
        %v1322 = vsub.f32 %v1307, %v1317
        %v1323 = vadd.f32 %v1321, 1e-05
        %v1324 = vrsqrt.pop %v1323
        %v1325 = vmul.f32 %v1324, %v1323
        %v1326 = vmul.f32 %v1325, %v1324
        %v1327 = vmul.f32 0.5, %v1326
        %v1328 = vsub.f32 1.5, %v1327
        %v1329 = vmul.f32 %v1324, %v1328
        %vm1330 = vweird.f32 %v1323
        %vm1331 = vweird.f32 %v1324
        %vm1332 = vmor %vm1330, %vm1331
        %v1333 = vsel %vm1332, %v1324, %v1329
        %v1334 = vmul.f32 %v1322, %v1333
        %v1336 = vperm.slane %v1308, 0
        %v1338 = vmul.f32 %v1334, %v1336
        %v1340 = vperm.slane %v1309, 0
        %v1342 = vadd.f32 %v1338, %v1340
        %v1343 = vld [vmem:[%s7] sm:$0xff]
        %v1344 = vld [vmem:[%s7 + $0x8] sm:$0xff]
        %v1345 = vld [vmem:[%s7 + $0x10] sm:$0xff]
        %v1346 = vld [vmem:[%s7 + $0x18] sm:$0xff]
        %v1347 = vld [vmem:[%s8] sm:$0x1]
        %v1349 = vperm.slane %v1347, 0
        %v1352 = vsel %vm467, %v1342, 0
        %1354 = vmatpush.msra.mxu0 0.0
        %1355 = vmatpush.msra.mxu0 0.0
        %1356 = vmatpush.msra.mxu0 0.0
        %1357 = vmatpush.msra.mxu0 0.0
        %1358 = vmatpush.msra.mxu0 0.0
        %1359 = vmatpush.msra.mxu0 0.0
        %1360 = vmatpush.msra.mxu0 0.0
        %1361 = vmatpush.msra.mxu0 0.0
        %1362 = vmatpush.msra.mxu0 0.0
        %1363 = vmatpush.msra.mxu0 0.0
        %1364 = vmatpush.msra.mxu0 0.0
        %1365 = vmatpush.msra.mxu0 0.0
        %1366 = vmatpush.msra.mxu0 %v1346
        %1367 = vmatpush.msra.mxu0 %v1345
        %1368 = vmatpush.msra.mxu0 %v1344
        %1369 = vmatpush.msra.mxu0 %v1343
        %1370 = vmatmul.f32.gmra.mxu0 %v1352
        %v1371 = vpop.f32.mrf.mxu0
        %v1372 = vadd.f32 %v1349, %v1371
        %1373 = vdwg.mxu0
        %v1374 = vmax.f32 %v1372, 0.0
        %v1375 = vld [vmem:[%s9] sm:$0xff]
        %v1376 = vld [vmem:[%s9 + $0x8] sm:$0xff]
        %v1377 = vld [vmem:[%s9 + $0x10] sm:$0xff]
        %v1378 = vld [vmem:[%s9 + $0x18] sm:$0xff]
        %v1379 = vld [vmem:[%s9 + $0x20] sm:$0xff]
        %v1380 = vld [vmem:[%s9 + $0x28] sm:$0xff]
        %v1381 = vld [vmem:[%s9 + $0x30] sm:$0xff]
        %v1382 = vld [vmem:[%s9 + $0x38] sm:$0xff]
        %v1383 = vld [vmem:[%s10] sm:$0x1]
        %v1385 = vperm.slane %v1383, 0
        %vm1387 = vcmask 523264
        %v1389 = vsel %vm1387, %v1374, 0
        %1391 = vmatpush.msra.mxu0 0.0
        %1392 = vmatpush.msra.mxu0 0.0
        %1393 = vmatpush.msra.mxu0 0.0
        %1394 = vmatpush.msra.mxu0 0.0
        %1395 = vmatpush.msra.mxu0 0.0
        %1396 = vmatpush.msra.mxu0 0.0
        %1397 = vmatpush.msra.mxu0 0.0
        %1398 = vmatpush.msra.mxu0 0.0
        %1399 = vmatpush.msra.mxu0 %v1382
        %1400 = vmatpush.msra.mxu0 %v1381
        %1401 = vmatpush.msra.mxu0 %v1380
        %1402 = vmatpush.msra.mxu0 %v1379
        %1403 = vmatpush.msra.mxu0 %v1378
        %1404 = vmatpush.msra.mxu0 %v1377
        %1405 = vmatpush.msra.mxu0 %v1376
        %1406 = vmatpush.msra.mxu0 %v1375
        %1407 = vmatmul.f32.gmra.mxu0 %v1389
        %v1408 = vpop.f32.mrf.mxu0
        %v1409 = vadd.f32 %v1385, %v1408
        %1410 = vdwg.mxu0
        %v1411 = vadd.f32 %v1342, %v1409
        %v1412 = vld [vmem:[%s11] sm:$0x1]
        %v1413 = vld [vmem:[%s12] sm:$0x1]
        %v1414 = vsel %vm467, %v1411, 0.0
        %1415 = vadd.xlane.f32.xlu0 %v1414
        %v1416 = vpop.xlane.xlu0 %1415
        %v1417 = vmul.f32 %v1411, %v1411
        %v1418 = vsel %vm467, %v1417, 0.0
        %1419 = vadd.xlane.f32.xlu0 %v1418
        %v1420 = vpop.xlane.xlu0 %1419
        %v1421 = vmul.f32 %v1416, 0.03125
        %v1422 = vmul.f32 %v1420, 0.03125
        %v1423 = vmul.f32 %v1421, %v1421
        %v1424 = vsub.f32 %v1422, %v1423
        %v1425 = vmax.f32 %v1424, 0.0
        %v1426 = vsub.f32 %v1411, %v1421
        %v1427 = vadd.f32 %v1425, 1e-05
        %v1428 = vrsqrt.pop %v1427
        %v1429 = vmul.f32 %v1428, %v1427
        %v1430 = vmul.f32 %v1429, %v1428
        %v1431 = vmul.f32 0.5, %v1430
        %v1432 = vsub.f32 1.5, %v1431
        %v1433 = vmul.f32 %v1428, %v1432
        %vm1434 = vweird.f32 %v1427
        %vm1435 = vweird.f32 %v1428
        %vm1436 = vmor %vm1434, %vm1435
        %v1437 = vsel %vm1436, %v1428, %v1433
        %v1438 = vmul.f32 %v1426, %v1437
        %v1440 = vperm.slane %v1412, 0
        %v1442 = vmul.f32 %v1438, %v1440
        %v1444 = vperm.slane %v1413, 0
        %v1446 = vadd.f32 %v1442, %v1444
        %1447 = vst.msk [vmem:[%s457] sm:$0xff] %vm467, %v1446
        %s1448 = sand.u32 %s316, 1
        %s1449 = scalar_lea.sflag [#allocation4], %s1448
        %s1450 = sand.u32 %s316, 1
        %s1451 = smul.addr %s1450, 8
        %s1452 = scalar_lea.vmem [#allocation5], %s1451
        // Predicated region
        $region77: #{tpu_custom_call.1} parent=71 // pred_check
          %p1453 = pneg %p326
        $region78: #{tpu_custom_call.1} parent=71 // pred_check_branch
          %1455 = sbr.rel (%p1453) target = $region80
        $region79: #{tpu_custom_call.1} parent=71 // pred_region
          %1457 = vsyncadd %s1449, 0
          %s1458 = smul.addr %s30, 8
          %s1459 = scalar_lea.hbm %s13, %s1458
          %s1461 = sshll.u32 %s1452, 4
          %s1462 = int_to_ptr.vmem [resolvable:$true] %s1461
          %s1463 = sshll.u32 %s1459, 4
          %s1464 = int_to_ptr.hbm [resolvable:$true] %s1463
          %1466 = dma.vmem_to_hbm [thread:$0]  %s1462, 128, %s1464, %s1449
        $region80: #{tpu_custom_call.1} parent=71 // pred_fallthru
          _
      $region72: #{tpu_custom_call.1} parent=5 // pred_fallthru
        _
      %p1467 = scmp.le.s32.totalorder 2, %s25
      // Predicated region
      $region81: #{tpu_custom_call.1} parent=5 // pred_check
        %p1468 = pneg %p1467
      $region82: #{tpu_custom_call.1} parent=5 // pred_check_branch
        %1470 = sbr.rel (%p1468) target = $region84
      $region83: #{tpu_custom_call.1} parent=5 // pred_region
        %s1471 = ssub.s32 %s25, 2
        // Predicated region
        $region85: #{tpu_custom_call.1} parent=83 // pred_check
          %p1472 = pneg %p332
        $region86: #{tpu_custom_call.1} parent=83 // pred_check_branch
          %1474 = sbr.rel (%p1472) target = $region88
        $region87: #{tpu_custom_call.1} parent=83 // pred_region
          %s1475 = sand.u32 %s317, 1
          %s1476 = scalar_lea.sflag [#allocation4], %s1475
          %s1477 = sand.u32 %s317, 1
          %s1478 = smul.addr %s1477, 8
          %s1479 = scalar_lea.vmem [#allocation5], %s1478
          %1481 = dma.done %s1476, 128
        $region88: #{tpu_custom_call.1} parent=83 // pred_fallthru
          _
      $region84: #{tpu_custom_call.1} parent=5 // pred_fallthru
        _
    $region6: #{tpu_custom_call.1} parent=1 // loop_footer
      %s29 = sadd.s32 1, %s25
    $region7: #{tpu_custom_call.1} parent=1 // loop_footer_branch
      %24 = sbr.rel target = $region3
    $region8: #{tpu_custom_call.1} parent=1 // loop_exit
      _
    %1482 = vsyncpa [#allocation3], 1
    %s1483 = scalar_lea.sflag [#allocation3], 1
    %1484 = vsyncpa %s1483, 1
    %1485 = vsyncpa [#allocation4], 1
    %s1486 = scalar_lea.sflag [#allocation4], 1
    %1487 = vsyncpa %s1486, 1

</llo_original>
